<compile_context>
chip_gen: v6e
topology: v6e:2x2x1
jax: 0.10.0
libtpu: 0.0.40
codegen_flags: <defaults>
</compile_context>

<pallas_src>
import functools

import jax
import jax.numpy as jnp
from jax.experimental import pallas as pl
from jax.experimental.pallas import tpu as pltpu

# ----------------------------- model config ---------------------------------
K1, S1 = 10, 5   # conv1 kernel / stride (C_in = 1)
K2, S2 = 3, 2    # conv2 kernel / stride
C = 32           # feature-extractor channels
H = 64           # encoder hidden size
V = 28           # vocab size (aux head output)
LN_EPS = 1e-5


# ------------------------------ helpers --------------------------------------
def _gelu(y):
    # tanh-approx GELU (EUP tanh); PyTorch nn.GELU default is erf.
    # TODO(synk): switch to exact erf GELU if numerical parity vs torch is required.
    c0 = jnp.float32(0.7978845608028654)  # sqrt(2/pi)
    return 0.5 * y * (1.0 + jnp.tanh(c0 * (y + 0.044715 * y * y * y)))


# ------------------------------ Pallas kernel ---------------------------------
def _model_kernel(*refs, nb, m, normalize, apply_log_softmax, append_star):
    """Fused wav2vec2-style forward for one block of `nb` batch elements.

    Time-on-lanes layout: activations are (channels, time).
      xa[k, t] = wave[10 t + k]      (k = 0..9)  -> even conv1 frames h1[2t]
      xb[k, t] = wave[10 t + 5 + k]  (k = 0..9)  -> odd  conv1 frames h1[2t+1]
      h1e = GELU(w1t @ xa + b1)  (C, m)
      h1o = GELU(w1t @ xb + b1)  (C, m)
      conv2 frame t taps: h1e[:, t], h1o[:, t], h1e[:, t+1]   (t = 0..m-2)
      logits = wht @ GELU(conv2) + bht   (V, t2)   (folded proj+aux head)
    """
    if normalize:
        (ln_ref, xa_ref, xb_ref, w1_ref, b1_ref, w2_ref, b2_ref,
         wh_ref, bh_ref, o_ref) = refs
    else:
        (xa_ref, xb_ref, w1_ref, b1_ref, w2_ref, b2_ref,
         wh_ref, bh_ref, o_ref) = refs
        ln_ref = None

    t2 = m - 1

    # Weights loaded once per grid step, hoisted out of the batch loop.
    w1t = w1_ref[...]            # (C, K1)
    b1t = b1_ref[...]            # (C, 1)
    w2t0 = w2_ref[0]             # (C, C)  conv2 tap 0 (transposed)
    w2t1 = w2_ref[1]             # (C, C)  conv2 tap 1
    w2t2 = w2_ref[2]             # (C, C)  conv2 tap 2
    b2t = b2_ref[...]            # (C, 1)
    wht = wh_ref[...]            # (V, C)  folded proj+aux head (transposed)
    bht = bh_ref[...]            # (V, 1)

    # nb is small (<= 8).  TODO(synk): switch to lax.fori_loop if nb grows so
    # live ranges stay bounded.
    for b in range(nb):
        xa = xa_ref[b]           # (K1, m)  time on lanes
        xb = xb_ref[b]           # (K1, m)

        if normalize:
            scale = ln_ref[0]    # 1 / std        (global LN, hoisted to XLA)
            shift = ln_ref[1]    # -mean / std
            xa = xa * scale + shift
            xb = xb * scale + shift

        # ---- conv1 (k=10, stride 5) + GELU; even/odd frames, no unaligned slices
        h1e = _gelu(jnp.dot(w1t, xa, preferred_element_type=jnp.float32) + b1t)  # (C, m)
        h1o = _gelu(jnp.dot(w1t, xb, preferred_element_type=jnp.float32) + b1t)  # (C, m)

        # ---- conv2 (k=3, stride 2) + GELU.  The h1[2t+2] tap is h1e shifted one
        # lane left; this single lane-offset slice is one XLU shift (idle slot).
        h1e_next = h1e[:, 1:m]                                                   # (C, t2)
        acc = (jnp.dot(w2t0, h1e[:, 0:t2], preferred_element_type=jnp.float32)
               + jnp.dot(w2t1, h1o[:, 0:t2], preferred_element_type=jnp.float32)
               + jnp.dot(w2t2, h1e_next, preferred_element_type=jnp.float32)
               + b2t)
        h2 = _gelu(acc)                                                          # (C, t2)

        # ---- fused encoder projection + aux head (single folded matmul)
        logits = jnp.dot(wht, h2, preferred_element_type=jnp.float32) + bht      # (V, t2)

        if apply_log_softmax:
            mval = jnp.max(logits, axis=0, keepdims=True)      # sublane reduce (XLU)
            z = logits - mval
            lse = jnp.log(jnp.sum(jnp.exp(z), axis=0, keepdims=True))
            logits = z - lse

        # ---- lane-dense store of the (vocab, time) tile; star row is a separate
        # slice store (no concatenate).
        if append_star:
            o_ref[b, 0:V, :] = logits
            o_ref[b, V:V + 1, :] = jnp.zeros((1, t2), jnp.float32)
        else:
            o_ref[b] = logits


# ------------------------------ forward wrapper --------------------------------
def init_params(key):
    ks = jax.random.split(key, 8)
    sc = 0.02
    return {
        "conv1_w": sc * jax.random.normal(ks[0], (K1 * 1, C), jnp.float32),
        "conv1_b": sc * jax.random.normal(ks[1], (1, C), jnp.float32),
        "conv2_w": sc * jax.random.normal(ks[2], (K2 * C, C), jnp.float32),
        "conv2_b": sc * jax.random.normal(ks[3], (1, C), jnp.float32),
        "proj_w": sc * jax.random.normal(ks[4], (C, H), jnp.float32),
        "proj_b": sc * jax.random.normal(ks[5], (1, H), jnp.float32),
        "aux_w": sc * jax.random.normal(ks[6], (H, V), jnp.float32),
        "aux_b": sc * jax.random.normal(ks[7], (1, V), jnp.float32),
    }


def _pick_batch_block(batch):
    # Block several batch rows per grid step to amortize per-step overhead, but
    # keep >= 2 grid blocks so both v7x TensorCores stay busy.
    for nb in (8, 4, 2):
        if batch % nb == 0 and batch // nb >= 2:
            return nb
    return 1


def wav2vec2_forward(waveforms, lengths, params, *,
                     normalize_waveform, apply_log_softmax, append_star):
    """Mirrors `_Wav2Vec2Model.forward(waveforms, lengths)`."""
    B, T = waveforms.shape
    assert T % K1 == 0, "this implementation requires T % 10 == 0"
    M = T // K1                  # number of 10-sample blocks = even conv1 frames
    T2 = M - 1                   # conv2 output frames
    v_out = V + 1 if append_star else V
    NB = _pick_batch_block(B)

    f32 = jnp.float32
    wave = waveforms.astype(f32)

    # Lane-dense, time-on-lanes input layouts (cheap XLA layout plumbing):
    #   xa[b, k, t] = wave[b, 10 t + k]       -> even conv1 frames
    #   xb[b, k, t] = wave[b, 10 t + 5 + k]   -> odd  conv1 frames
    xa = jnp.transpose(wave.reshape(B, M, K1), (0, 2, 1))                 # (B, K1, M)
    wave_s = jnp.concatenate([wave[:, S1:], jnp.zeros((B, S1), f32)], axis=1)
    xb = jnp.transpose(wave_s.reshape(B, M, K1), (0, 2, 1))               # (B, K1, M)
    # (the zero lookahead only feeds the last, non-existent odd frame -> unused)

    # Transposed weights for the (channels, time) layout.
    w1t = params["conv1_w"].T.astype(f32)                                 # (C, K1)
    b1t = params["conv1_b"].T.astype(f32)                                 # (C, 1)
    w2 = params["conv2_w"].astype(f32)                                    # (K2*C, C)
    w2t = jnp.stack([w2[k * C:(k + 1) * C, :].T for k in range(K2)], 0)   # (K2, C, C)
    b2t = params["conv2_b"].T.astype(f32)                                 # (C, 1)
    # Fold proj + aux (affine-affine, no nonlinearity between) into one head.
    wh = jnp.dot(params["proj_w"], params["aux_w"])                       # (C, V)
    bh = jnp.dot(params["proj_b"], params["aux_w"]) + params["aux_b"]     # (1, V)
    wht = wh.T.astype(f32)                                                # (V, C)
    bht = bh.T.astype(f32)                                                # (V, 1)

    args = []
    in_specs = []
    if normalize_waveform:
        # Global layer-norm statistics over the full (B, T) tensor as a plain
        # lane-dense XLA reduction (two-pass for better conditioning); kernel
        # only applies `x * scale + shift` with scalars from SMEM.
        mean = jnp.mean(wave)
        var = jnp.mean(jnp.square(wave - mean))
        inv_std = jax.lax.rsqrt(var + LN_EPS)
        ln_scalars = jnp.stack([inv_std, -mean * inv_std]).astype(f32)    # (2,)
        args.append(ln_scalars)
        in_specs.append(pl.BlockSpec(memory_space=pltpu.MemorySpace.SMEM))

    args += [xa, xb, w1t, b1t, w2t, b2t, wht, bht]
    in_specs += [
        pl.BlockSpec((NB, K1, M), lambda g: (g, 0, 0)),
        pl.BlockSpec((NB, K1, M), lambda g: (g, 0, 0)),
        pl.BlockSpec((C, K1), lambda g: (0, 0)),
        pl.BlockSpec((C, 1), lambda g: (0, 0)),
        pl.BlockSpec((K2, C, C), lambda g: (0, 0, 0)),
        pl.BlockSpec((C, 1), lambda g: (0, 0)),
        pl.BlockSpec((V, C), lambda g: (0, 0)),
        pl.BlockSpec((V, 1), lambda g: (0, 0)),
    ]

    kernel = functools.partial(
        _model_kernel, nb=NB, m=M,
        normalize=normalize_waveform,
        apply_log_softmax=apply_log_softmax,
        append_star=append_star)

    # The kernel emits the transposed (B, vocab, frames) array so both compute
    # and stores are lane-dense along time; untranspose once in XLA.
    out_t = pl.pallas_call(
        kernel,
        out_shape=jax.ShapeDtypeStruct((B, v_out, T2), f32),
        grid=(B // NB,),
        in_specs=in_specs,
        out_specs=pl.BlockSpec((NB, v_out, T2), lambda g: (g, 0, 0)),
        compiler_params=pltpu.CompilerParams(
            dimension_semantics=("parallel",)),
    )(*args)
    out = jnp.transpose(out_t, (0, 2, 1))                                 # (B, T2, v_out)

    out_lengths = None
    if lengths is not None:
        l1 = (lengths - K1) // S1 + 1
        out_lengths = (l1 - K2) // S2 + 1

    return out, out_lengths


# ---------------------------------- main ---------------------------------------
if __name__ == "__main__":
    key = jax.random.PRNGKey(0)
    k_wave, k_params = jax.random.split(key)

    B, T = 2, 480
    waveforms = jax.random.normal(k_wave, (B, T), jnp.float32)
    lengths = jnp.array([480, 400], dtype=jnp.int32)
    params = init_params(k_params)

    fwd = jax.jit(functools.partial(
        wav2vec2_forward,
        normalize_waveform=True, apply_log_softmax=True, append_star=True))

    out, out_lengths = fwd(waveforms, lengths, params)
    jax.block_until_ready(out)
    jax.block_until_ready(out_lengths)

    # Sanity: shape (B, T_frames, V+1) = (2, 47, 29); lengths -> (47, 39)
    t_frames = (((T - K1) // S1 + 1) - K2) // S2 + 1
    assert out.shape == (B, t_frames, V + 1), out.shape
    assert out_lengths.shape == (B,)
    print("KERNEL_OK")
</pallas_src>

<mosaic_0001>
module attributes {stable_mosaic.version = 11 : i64} {
  func.func @_model_kernel(%arg0: i32, %arg1: memref<2xf32, #tpu.memory_space<smem>>, %arg2: memref<1x10x48xf32, #tpu.memory_space<vmem>>, %arg3: memref<1x10x48xf32, #tpu.memory_space<vmem>>, %arg4: memref<32x10xf32, #tpu.memory_space<vmem>>, %arg5: memref<32x1xf32, #tpu.memory_space<vmem>>, %arg6: memref<3x32x32xf32, #tpu.memory_space<vmem>>, %arg7: memref<32x1xf32, #tpu.memory_space<vmem>>, %arg8: memref<28x32xf32, #tpu.memory_space<vmem>>, %arg9: memref<28x1xf32, #tpu.memory_space<vmem>>, %arg10: memref<1x29x47xf32, #tpu.memory_space<vmem>>) attributes {dimension_semantics = [#tpu.dimension_semantics<parallel>], iteration_bounds = array<i64: 2>, scalar_prefetch = 0 : i64, scratch_operands = 0 : i64, tpu.core_type = #tpu.core_type<tc>, window_params = [{transform_indices = @transform_0, window_bounds = array<i64: 2>}, {transform_indices = @transform_1, window_bounds = array<i64: 1, 10, 48>}, {transform_indices = @transform_2, window_bounds = array<i64: 1, 10, 48>}, {pipeline_mode = #tpu.pipeline_mode<synchronous>, transform_indices = @transform_3, window_bounds = array<i64: 32, 10>}, {pipeline_mode = #tpu.pipeline_mode<synchronous>, transform_indices = @transform_4, window_bounds = array<i64: 32, 1>}, {pipeline_mode = #tpu.pipeline_mode<synchronous>, transform_indices = @transform_5, window_bounds = array<i64: 3, 32, 32>}, {pipeline_mode = #tpu.pipeline_mode<synchronous>, transform_indices = @transform_6, window_bounds = array<i64: 32, 1>}, {pipeline_mode = #tpu.pipeline_mode<synchronous>, transform_indices = @transform_7, window_bounds = array<i64: 28, 32>}, {pipeline_mode = #tpu.pipeline_mode<synchronous>, transform_indices = @transform_8, window_bounds = array<i64: 28, 1>}, {transform_indices = @transform_9, window_bounds = array<i64: 1, 29, 47>}]} {
    %c0 = arith.constant 0 : index
    %c0_0 = arith.constant 0 : index
    %0 = vector.load %arg4[%c0, %c0_0] : memref<32x10xf32, #tpu.memory_space<vmem>>, vector<32x10xf32>
    %c0_1 = arith.constant 0 : index
    %c0_2 = arith.constant 0 : index
    %1 = vector.load %arg5[%c0_1, %c0_2] : memref<32x1xf32, #tpu.memory_space<vmem>>, vector<32x1xf32>
    %c0_3 = arith.constant 0 : index
    %c0_4 = arith.constant 0 : index
    %c0_5 = arith.constant 0 : index
    %2 = vector.load %arg6[%c0_3, %c0_4, %c0_5] : memref<3x32x32xf32, #tpu.memory_space<vmem>>, vector<1x32x32xf32>
    %3 = vector.shape_cast %2 : vector<1x32x32xf32> to vector<32x32xf32>
    %c1 = arith.constant 1 : index
    %c0_6 = arith.constant 0 : index
    %c0_7 = arith.constant 0 : index
    %4 = vector.load %arg6[%c1, %c0_6, %c0_7] : memref<3x32x32xf32, #tpu.memory_space<vmem>>, vector<1x32x32xf32>
    %5 = vector.shape_cast %4 : vector<1x32x32xf32> to vector<32x32xf32>
    %c2 = arith.constant 2 : index
    %c0_8 = arith.constant 0 : index
    %c0_9 = arith.constant 0 : index
    %6 = vector.load %arg6[%c2, %c0_8, %c0_9] : memref<3x32x32xf32, #tpu.memory_space<vmem>>, vector<1x32x32xf32>
    %7 = vector.shape_cast %6 : vector<1x32x32xf32> to vector<32x32xf32>
    %c0_10 = arith.constant 0 : index
    %c0_11 = arith.constant 0 : index
    %8 = vector.load %arg7[%c0_10, %c0_11] : memref<32x1xf32, #tpu.memory_space<vmem>>, vector<32x1xf32>
    %c0_12 = arith.constant 0 : index
    %c0_13 = arith.constant 0 : index
    %9 = vector.load %arg8[%c0_12, %c0_13] : memref<28x32xf32, #tpu.memory_space<vmem>>, vector<28x32xf32>
    %c0_14 = arith.constant 0 : index
    %c0_15 = arith.constant 0 : index
    %10 = vector.load %arg9[%c0_14, %c0_15] : memref<28x1xf32, #tpu.memory_space<vmem>>, vector<28x1xf32>
    %c0_16 = arith.constant 0 : index
    %c0_17 = arith.constant 0 : index
    %c0_18 = arith.constant 0 : index
    %11 = vector.load %arg2[%c0_16, %c0_17, %c0_18] : memref<1x10x48xf32, #tpu.memory_space<vmem>>, vector<1x10x48xf32>
    %12 = vector.shape_cast %11 : vector<1x10x48xf32> to vector<10x48xf32>
    %c0_19 = arith.constant 0 : index
    %c0_20 = arith.constant 0 : index
    %c0_21 = arith.constant 0 : index
    %13 = vector.load %arg3[%c0_19, %c0_20, %c0_21] : memref<1x10x48xf32, #tpu.memory_space<vmem>>, vector<1x10x48xf32>
    %14 = vector.shape_cast %13 : vector<1x10x48xf32> to vector<10x48xf32>
    %c0_22 = arith.constant 0 : index
    %15 = memref.load %arg1[%c0_22] : memref<2xf32, #tpu.memory_space<smem>>
    %c1_23 = arith.constant 1 : index
    %16 = memref.load %arg1[%c1_23] : memref<2xf32, #tpu.memory_space<smem>>
    %17 = vector.broadcast %15 : f32 to vector<10x48xf32>
    %18 = arith.mulf %12, %17 : vector<10x48xf32>
    %19 = vector.broadcast %16 : f32 to vector<10x48xf32>
    %20 = arith.addf %18, %19 : vector<10x48xf32>
    %21 = vector.broadcast %15 : f32 to vector<10x48xf32>
    %22 = arith.mulf %14, %21 : vector<10x48xf32>
    %23 = vector.broadcast %16 : f32 to vector<10x48xf32>
    %24 = arith.addf %22, %23 : vector<10x48xf32>
    %cst = arith.constant dense<0.000000e+00> : vector<32x48xf32>
    %25 = tpu.matmul %0, %20, %cst {dimension_numbers = #tpu.dot_dimension_numbers<[1], [0], [0], [1], [0, 0, 1, 1], [], []>} : vector<32x10xf32>, vector<10x48xf32>, vector<32x48xf32> -> vector<32x48xf32>
    %26 = vector.broadcast %1 : vector<32x1xf32> to vector<32x48xf32>
    %27 = arith.addf %25, %26 : vector<32x48xf32>
    %cst_24 = arith.constant 5.000000e-01 : f32
    %28 = vector.broadcast %cst_24 : f32 to vector<32x48xf32>
    %29 = arith.mulf %28, %27 : vector<32x48xf32>
    %cst_25 = arith.constant 4.471500e-02 : f32
    %30 = vector.broadcast %cst_25 : f32 to vector<32x48xf32>
    %31 = arith.mulf %30, %27 : vector<32x48xf32>
    %32 = arith.mulf %31, %27 : vector<32x48xf32>
    %33 = arith.mulf %32, %27 : vector<32x48xf32>
    %34 = arith.addf %27, %33 : vector<32x48xf32>
    %cst_26 = arith.constant 0.797884583 : f32
    %35 = vector.broadcast %cst_26 : f32 to vector<32x48xf32>
    %36 = arith.mulf %35, %34 : vector<32x48xf32>
    %37 = math.tanh %36 : vector<32x48xf32>
    %cst_27 = arith.constant 1.000000e+00 : f32
    %38 = vector.broadcast %cst_27 : f32 to vector<32x48xf32>
    %39 = arith.addf %38, %37 : vector<32x48xf32>
    %40 = arith.mulf %29, %39 : vector<32x48xf32>
    %cst_28 = arith.constant dense<0.000000e+00> : vector<32x48xf32>
    %41 = tpu.matmul %0, %24, %cst_28 {dimension_numbers = #tpu.dot_dimension_numbers<[1], [0], [0], [1], [0, 0, 1, 1], [], []>} : vector<32x10xf32>, vector<10x48xf32>, vector<32x48xf32> -> vector<32x48xf32>
    %42 = vector.broadcast %1 : vector<32x1xf32> to vector<32x48xf32>
    %43 = arith.addf %41, %42 : vector<32x48xf32>
    %cst_29 = arith.constant 5.000000e-01 : f32
    %44 = vector.broadcast %cst_29 : f32 to vector<32x48xf32>
    %45 = arith.mulf %44, %43 : vector<32x48xf32>
    %cst_30 = arith.constant 4.471500e-02 : f32
    %46 = vector.broadcast %cst_30 : f32 to vector<32x48xf32>
    %47 = arith.mulf %46, %43 : vector<32x48xf32>
    %48 = arith.mulf %47, %43 : vector<32x48xf32>
    %49 = arith.mulf %48, %43 : vector<32x48xf32>
    %50 = arith.addf %43, %49 : vector<32x48xf32>
    %cst_31 = arith.constant 0.797884583 : f32
    %51 = vector.broadcast %cst_31 : f32 to vector<32x48xf32>
    %52 = arith.mulf %51, %50 : vector<32x48xf32>
    %53 = math.tanh %52 : vector<32x48xf32>
    %cst_32 = arith.constant 1.000000e+00 : f32
    %54 = vector.broadcast %cst_32 : f32 to vector<32x48xf32>
    %55 = arith.addf %54, %53 : vector<32x48xf32>
    %56 = arith.mulf %45, %55 : vector<32x48xf32>
    %57 = vector.extract_strided_slice %40 {offsets = [0, 1], sizes = [32, 47], strides = [1, 1]} : vector<32x48xf32> to vector<32x47xf32>
    %58 = vector.extract_strided_slice %40 {offsets = [0, 0], sizes = [32, 47], strides = [1, 1]} : vector<32x48xf32> to vector<32x47xf32>
    %cst_33 = arith.constant dense<0.000000e+00> : vector<32x47xf32>
    %59 = tpu.matmul %3, %58, %cst_33 {dimension_numbers = #tpu.dot_dimension_numbers<[1], [0], [0], [1], [0, 0, 1, 1], [], []>} : vector<32x32xf32>, vector<32x47xf32>, vector<32x47xf32> -> vector<32x47xf32>
    %60 = vector.extract_strided_slice %56 {offsets = [0, 0], sizes = [32, 47], strides = [1, 1]} : vector<32x48xf32> to vector<32x47xf32>
    %cst_34 = arith.constant dense<0.000000e+00> : vector<32x47xf32>
    %61 = tpu.matmul %5, %60, %cst_34 {dimension_numbers = #tpu.dot_dimension_numbers<[1], [0], [0], [1], [0, 0, 1, 1], [], []>} : vector<32x32xf32>, vector<32x47xf32>, vector<32x47xf32> -> vector<32x47xf32>
    %62 = arith.addf %59, %61 : vector<32x47xf32>
    %cst_35 = arith.constant dense<0.000000e+00> : vector<32x47xf32>
    %63 = tpu.matmul %7, %57, %cst_35 {dimension_numbers = #tpu.dot_dimension_numbers<[1], [0], [0], [1], [0, 0, 1, 1], [], []>} : vector<32x32xf32>, vector<32x47xf32>, vector<32x47xf32> -> vector<32x47xf32>
    %64 = arith.addf %62, %63 : vector<32x47xf32>
    %65 = vector.broadcast %8 : vector<32x1xf32> to vector<32x47xf32>
    %66 = arith.addf %64, %65 : vector<32x47xf32>
    %cst_36 = arith.constant 5.000000e-01 : f32
    %67 = vector.broadcast %cst_36 : f32 to vector<32x47xf32>
    %68 = arith.mulf %67, %66 : vector<32x47xf32>
    %cst_37 = arith.constant 4.471500e-02 : f32
    %69 = vector.broadcast %cst_37 : f32 to vector<32x47xf32>
    %70 = arith.mulf %69, %66 : vector<32x47xf32>
    %71 = arith.mulf %70, %66 : vector<32x47xf32>
    %72 = arith.mulf %71, %66 : vector<32x47xf32>
    %73 = arith.addf %66, %72 : vector<32x47xf32>
    %cst_38 = arith.constant 0.797884583 : f32
    %74 = vector.broadcast %cst_38 : f32 to vector<32x47xf32>
    %75 = arith.mulf %74, %73 : vector<32x47xf32>
    %76 = math.tanh %75 : vector<32x47xf32>
    %cst_39 = arith.constant 1.000000e+00 : f32
    %77 = vector.broadcast %cst_39 : f32 to vector<32x47xf32>
    %78 = arith.addf %77, %76 : vector<32x47xf32>
    %79 = arith.mulf %68, %78 : vector<32x47xf32>
    %cst_40 = arith.constant dense<0.000000e+00> : vector<28x47xf32>
    %80 = tpu.matmul %9, %79, %cst_40 {dimension_numbers = #tpu.dot_dimension_numbers<[1], [0], [0], [1], [0, 0, 1, 1], [], []>} : vector<28x32xf32>, vector<32x47xf32>, vector<28x47xf32> -> vector<28x47xf32>
    %81 = vector.broadcast %10 : vector<28x1xf32> to vector<28x47xf32>
    %82 = arith.addf %80, %81 : vector<28x47xf32>
    %cst_41 = arith.constant dense<0xFF800000> : vector<47xf32>
    %83 = vector.multi_reduction <maximumf>, %82, %cst_41 [0] : vector<28x47xf32> to vector<47xf32>
    %84 = vector.shape_cast %83 : vector<47xf32> to vector<1x47xf32>
    %85 = vector.broadcast %84 : vector<1x47xf32> to vector<28x47xf32>
    %86 = arith.subf %82, %85 : vector<28x47xf32>
    %87 = math.exp %86 : vector<28x47xf32>
    %cst_42 = arith.constant dense<0.000000e+00> : vector<47xf32>
    %88 = vector.multi_reduction <add>, %87, %cst_42 [0] : vector<28x47xf32> to vector<47xf32>
    %89 = vector.shape_cast %88 : vector<47xf32> to vector<1x47xf32>
    %90 = math.log %89 : vector<1x47xf32>
    %91 = vector.broadcast %90 : vector<1x47xf32> to vector<28x47xf32>
    %92 = arith.subf %86, %91 : vector<28x47xf32>
    %c0_43 = arith.constant 0 : index
    %c0_44 = arith.constant 0 : index
    %c0_45 = arith.constant 0 : index
    %93 = vector.load %arg10[%c0_43, %c0_44, %c0_45] : memref<1x29x47xf32, #tpu.memory_space<vmem>>, vector<1x28x47xf32>
    %94 = vector.shape_cast %93 : vector<1x28x47xf32> to vector<28x47xf32>
    %95 = vector.shape_cast %92 : vector<28x47xf32> to vector<1x28x47xf32>
    tpu.vector_store %arg10[%c0_43, %c0_44, %c0_45], %95 {strides = array<i32>} : memref<1x29x47xf32, #tpu.memory_space<vmem>>, vector<1x28x47xf32>,
    %cst_46 = arith.constant 0.000000e+00 : f32
    %96 = vector.broadcast %cst_46 : f32 to vector<1x47xf32>
    %c0_47 = arith.constant 0 : index
    %c28 = arith.constant 28 : index
    %c0_48 = arith.constant 0 : index
    %97 = vector.load %arg10[%c0_47, %c28, %c0_48] : memref<1x29x47xf32, #tpu.memory_space<vmem>>, vector<1x1x47xf32>
    %98 = vector.shape_cast %97 : vector<1x1x47xf32> to vector<1x47xf32>
    %99 = vector.shape_cast %96 : vector<1x47xf32> to vector<1x1x47xf32>
    tpu.vector_store %arg10[%c0_47, %c28, %c0_48], %99 {strides = array<i32>} : memref<1x29x47xf32, #tpu.memory_space<vmem>>, vector<1x1x47xf32>,
    return
  }
  func.func @transform_0(%arg0: i32) -> i32 {
    %c0_i32 = arith.constant 0 : i32
    %c0_i32_0 = arith.constant 0 : i32
    return %c0_i32 : i32
  }
  func.func @transform_1(%arg0: i32) -> (i32, i32, i32) {
    %c0_i32 = arith.constant 0 : i32
    %c0_i32_0 = arith.constant 0 : i32
    %c0_i32_1 = arith.constant 0 : i32
    return %arg0, %c0_i32, %c0_i32_0 : i32, i32, i32
  }
  func.func @transform_2(%arg0: i32) -> (i32, i32, i32) {
    %c0_i32 = arith.constant 0 : i32
    %c0_i32_0 = arith.constant 0 : i32
    %c0_i32_1 = arith.constant 0 : i32
    return %arg0, %c0_i32, %c0_i32_0 : i32, i32, i32
  }
  func.func @transform_3(%arg0: i32) -> (i32, i32) {
    %c0_i32 = arith.constant 0 : i32
    %c0_i32_0 = arith.constant 0 : i32
    %c0_i32_1 = arith.constant 0 : i32
    return %c0_i32, %c0_i32_0 : i32, i32
  }
  func.func @transform_4(%arg0: i32) -> (i32, i32) {
    %c0_i32 = arith.constant 0 : i32
    %c0_i32_0 = arith.constant 0 : i32
    %c0_i32_1 = arith.constant 0 : i32
    return %c0_i32, %c0_i32_0 : i32, i32
  }
  func.func @transform_5(%arg0: i32) -> (i32, i32, i32) {
    %c0_i32 = arith.constant 0 : i32
    %c0_i32_0 = arith.constant 0 : i32
    %c0_i32_1 = arith.constant 0 : i32
    %c0_i32_2 = arith.constant 0 : i32
    return %c0_i32, %c0_i32_0, %c0_i32_1 : i32, i32, i32
  }
  func.func @transform_6(%arg0: i32) -> (i32, i32) {
    %c0_i32 = arith.constant 0 : i32
    %c0_i32_0 = arith.constant 0 : i32
    %c0_i32_1 = arith.constant 0 : i32
    return %c0_i32, %c0_i32_0 : i32, i32
  }
  func.func @transform_7(%arg0: i32) -> (i32, i32) {
    %c0_i32 = arith.constant 0 : i32
    %c0_i32_0 = arith.constant 0 : i32
    %c0_i32_1 = arith.constant 0 : i32
    return %c0_i32, %c0_i32_0 : i32, i32
  }
  func.func @transform_8(%arg0: i32) -> (i32, i32) {
    %c0_i32 = arith.constant 0 : i32
    %c0_i32_0 = arith.constant 0 : i32
    %c0_i32_1 = arith.constant 0 : i32
    return %c0_i32, %c0_i32_0 : i32, i32
  }
  func.func @transform_9(%arg0: i32) -> (i32, i32, i32) {
    %c0_i32 = arith.constant 0 : i32
    %c0_i32_0 = arith.constant 0 : i32
    %c0_i32_1 = arith.constant 0 : i32
    return %arg0, %c0_i32, %c0_i32_0 : i32, i32, i32
  }
}

</mosaic_0001>

<llo_original>
// kernel: wav2vec2_forward.1
$region0: #{wav2vec2_forward.1}
  #allocation0 [shape = 'u32[]', space=smem, size = 0x4, offset = 0x4, fixed_abs, tag = 'smem constant byte address 0x4 - core index']
  #allocation1 [shape = 'u32[144,128]{1,0:T(1,128)}', space=vmem, size = 0x12000, scoped, tag = 'internal scratch']
  %s0 = inlined_call_operand.vmem [shape: f32[2], index: 0, kind: input, shape index: {}]
  %s1 = inlined_call_operand.vmem [shape: f32[2,10,48], index: 1, kind: input, shape index: {}]
  %s2 = inlined_call_operand.vmem [shape: f32[2,10,48], index: 2, kind: input, shape index: {}]
  %s3 = inlined_call_operand.vmem [shape: f32[32,10], index: 3, kind: input, shape index: {}]
  %s4 = inlined_call_operand.vmem [shape: f32[32,1], index: 4, kind: input, shape index: {}]
  %s5 = inlined_call_operand.vmem [shape: f32[3,32,32], index: 5, kind: input, shape index: {}]
  %s6 = inlined_call_operand.vmem [shape: f32[32,1], index: 6, kind: input, shape index: {}]
  %s7 = inlined_call_operand.vmem [shape: f32[28,32], index: 7, kind: input, shape index: {}]
  %s8 = inlined_call_operand.vmem [shape: f32[28,1], index: 8, kind: input, shape index: {}]
  %s9 = inlined_call_operand.vmem [shape: f32[2,29,47], index: 9, kind: output, shape index: {}]
  %s10 = sld [smem:[#allocation0]]
  $region73: #{wav2vec2_forward.1} parent=0
    _
  %s12 = ssub.s32 1, %s10
  %s13 = scalar_select 0, %s12, %s10
  $region1: #{wav2vec2_forward.1} parent=0
    #allocation2 [shape = 'u8[512]{0}', space=smem, size = 0x200, scoped, tag = 'input window, operand 0, single buffered']
    #allocation3 [shape = 's32[2]{0}', space=sflag, size = 0x8, scoped, tag = 'scoped memory for wav2vec2_forward.1']
    %14 = vsyncpa [#allocation3], 0
    loop: start=0, step=1, limit=4
    $region2: #{wav2vec2_forward.1} parent=1 // loop_pre_header
      _
    $region3: #{wav2vec2_forward.1} parent=1 // loop_header
      %s16 = sphi 0, %s20
      %p17 = scmp.ge.s32.totalorder %s16, 4
      %s24 = sphi 0, %s24
      %s26 = sphi 0, %s24
      %s27 = sphi 0, %s26
      %s41 = sphi 0, %s27
      %s47 = sphi 0, %s49
      %s50 = sphi 0, %s47
      %s51 = sphi 0, %s50
      %s67 = sphi 0, %s51
      %s73 = sphi 0, %s75
      %s76 = sphi 0, %s73
      %s77 = sphi 0, %s76
      %s93 = sphi 0, %s77
      %s97 = sphi 0, %s97
      %s99 = sphi 0, %s97
      %s100 = sphi 0, %s99
      %s114 = sphi 0, %s100
      %s118 = sphi 0, %s118
      %s120 = sphi 0, %s118
      %s121 = sphi 0, %s120
      %s135 = sphi 0, %s121
      %s139 = sphi 0, %s139
      %s141 = sphi 0, %s139
      %s142 = sphi 0, %s141
      %s156 = sphi 0, %s142
      %s160 = sphi 0, %s160
      %s162 = sphi 0, %s160
      %s163 = sphi 0, %s162
      %s177 = sphi 0, %s163
      %s181 = sphi 0, %s181
      %s183 = sphi 0, %s181
      %s184 = sphi 0, %s183
      %s198 = sphi 0, %s184
      %s202 = sphi 0, %s202
      %s204 = sphi 0, %s202
      %s205 = sphi 0, %s204
      %s219 = sphi 0, %s205
      %s225 = sphi 0, %s227
      %s228 = sphi 0, %s225
      %s229 = sphi 0, %s228
      %s245 = sphi 0, %s229
    $region4: #{wav2vec2_forward.1} parent=1 // loop_header_branch
      %19 = sbr.rel (%p17) target = $region8
    $region5: #{wav2vec2_forward.1} parent=1 // loop_body
      %s21 = ssub.s32 %s16, 1
      %s22 = ssub.s32 %s16, 2
      %s23 = sadd.s32 %s16, 1
      %s25 = sadd.s32 %s24, 1
      %p28 = scmp.eq.s32.totalorder %s16, 1
      %p29 = scmp.ne.s32.totalorder %s24, %s26
      %p30 = scmp.eq.s32.totalorder %s16, 0
      %p31 = por %p29, %p30
      %p32 = scmp.ne.s32.totalorder %s24, %s26
      %p33 = scmp.eq.s32.totalorder %s21, 1
      %p34 = por %p32, %p33
      %p35 = scmp.ne.s32.totalorder %s26, %s27
      %p36 = scmp.eq.s32.totalorder %s21, 0
      %p37 = por %p35, %p36
      %p38 = scmp.ne.s32.totalorder %s26, %s27
      %p39 = scmp.eq.s32.totalorder %s22, 1
      %p40 = por %p38, %p39
      %p42 = scmp.ne.s32.totalorder %s27, %s41
      %p43 = scmp.eq.s32.totalorder %s22, 0
      %p44 = por %p42, %p43
      %s45 = ssub.s32 %s16, %s23
      %p46 = scmp.eq.s32.totalorder %s45, 0
      %s48 = sadd.s32 %s47, 1
      %s49 = scalar_select %p46, %s47, %s48
      %p52 = pneg %p46
      %p53 = scmp.eq.s32.totalorder %s16, 1
      %p54 = por %p52, %p53
      %p55 = scmp.ne.s32.totalorder %s47, %s50
      %p56 = scmp.eq.s32.totalorder %s16, 0
      %p57 = por %p55, %p56
      %p58 = scmp.ne.s32.totalorder %s47, %s50
      %p59 = scmp.eq.s32.totalorder %s21, 1
      %p60 = por %p58, %p59
      %p61 = scmp.ne.s32.totalorder %s50, %s51
      %p62 = scmp.eq.s32.totalorder %s21, 0
      %p63 = por %p61, %p62
      %p64 = scmp.ne.s32.totalorder %s50, %s51
      %p65 = scmp.eq.s32.totalorder %s22, 1
      %p66 = por %p64, %p65
      %p68 = scmp.ne.s32.totalorder %s51, %s67
      %p69 = scmp.eq.s32.totalorder %s22, 0
      %p70 = por %p68, %p69
      %s71 = ssub.s32 %s16, %s23
      %p72 = scmp.eq.s32.totalorder %s71, 0
      %s74 = sadd.s32 %s73, 1
      %s75 = scalar_select %p72, %s73, %s74
      %p78 = pneg %p72
      %p79 = scmp.eq.s32.totalorder %s16, 1
      %p80 = por %p78, %p79
      %p81 = scmp.ne.s32.totalorder %s73, %s76
      %p82 = scmp.eq.s32.totalorder %s16, 0
      %p83 = por %p81, %p82
      %p84 = scmp.ne.s32.totalorder %s73, %s76
      %p85 = scmp.eq.s32.totalorder %s21, 1
      %p86 = por %p84, %p85
      %p87 = scmp.ne.s32.totalorder %s76, %s77
      %p88 = scmp.eq.s32.totalorder %s21, 0
      %p89 = por %p87, %p88
      %p90 = scmp.ne.s32.totalorder %s76, %s77
      %p91 = scmp.eq.s32.totalorder %s22, 1
      %p92 = por %p90, %p91
      %p94 = scmp.ne.s32.totalorder %s77, %s93
      %p95 = scmp.eq.s32.totalorder %s22, 0
      %p96 = por %p94, %p95
      %s98 = sadd.s32 %s97, 1
      %p101 = scmp.eq.s32.totalorder %s16, 1
      %p102 = scmp.ne.s32.totalorder %s97, %s99
      %p103 = scmp.eq.s32.totalorder %s16, 0
      %p104 = por %p102, %p103
      %p105 = scmp.ne.s32.totalorder %s97, %s99
      %p106 = scmp.eq.s32.totalorder %s21, 1
      %p107 = por %p105, %p106
      %p108 = scmp.ne.s32.totalorder %s99, %s100
      %p109 = scmp.eq.s32.totalorder %s21, 0
      %p110 = por %p108, %p109
      %p111 = scmp.ne.s32.totalorder %s99, %s100
      %p112 = scmp.eq.s32.totalorder %s22, 1
      %p113 = por %p111, %p112
      %p115 = scmp.ne.s32.totalorder %s100, %s114
      %p116 = scmp.eq.s32.totalorder %s22, 0
      %p117 = por %p115, %p116
      %s119 = sadd.s32 %s118, 1
      %p122 = scmp.eq.s32.totalorder %s16, 1
      %p123 = scmp.ne.s32.totalorder %s118, %s120
      %p124 = scmp.eq.s32.totalorder %s16, 0
      %p125 = por %p123, %p124
      %p126 = scmp.ne.s32.totalorder %s118, %s120
      %p127 = scmp.eq.s32.totalorder %s21, 1
      %p128 = por %p126, %p127
      %p129 = scmp.ne.s32.totalorder %s120, %s121
      %p130 = scmp.eq.s32.totalorder %s21, 0
      %p131 = por %p129, %p130
      %p132 = scmp.ne.s32.totalorder %s120, %s121
      %p133 = scmp.eq.s32.totalorder %s22, 1
      %p134 = por %p132, %p133
      %p136 = scmp.ne.s32.totalorder %s121, %s135
      %p137 = scmp.eq.s32.totalorder %s22, 0
      %p138 = por %p136, %p137
      %s140 = sadd.s32 %s139, 1
      %p143 = scmp.eq.s32.totalorder %s16, 1
      %p144 = scmp.ne.s32.totalorder %s139, %s141
      %p145 = scmp.eq.s32.totalorder %s16, 0
      %p146 = por %p144, %p145
      %p147 = scmp.ne.s32.totalorder %s139, %s141
      %p148 = scmp.eq.s32.totalorder %s21, 1
      %p149 = por %p147, %p148
      %p150 = scmp.ne.s32.totalorder %s141, %s142
      %p151 = scmp.eq.s32.totalorder %s21, 0
      %p152 = por %p150, %p151
      %p153 = scmp.ne.s32.totalorder %s141, %s142
      %p154 = scmp.eq.s32.totalorder %s22, 1
      %p155 = por %p153, %p154
      %p157 = scmp.ne.s32.totalorder %s142, %s156
      %p158 = scmp.eq.s32.totalorder %s22, 0
      %p159 = por %p157, %p158
      %s161 = sadd.s32 %s160, 1
      %p164 = scmp.eq.s32.totalorder %s16, 1
      %p165 = scmp.ne.s32.totalorder %s160, %s162
      %p166 = scmp.eq.s32.totalorder %s16, 0
      %p167 = por %p165, %p166
      %p168 = scmp.ne.s32.totalorder %s160, %s162
      %p169 = scmp.eq.s32.totalorder %s21, 1
      %p170 = por %p168, %p169
      %p171 = scmp.ne.s32.totalorder %s162, %s163
      %p172 = scmp.eq.s32.totalorder %s21, 0
      %p173 = por %p171, %p172
      %p174 = scmp.ne.s32.totalorder %s162, %s163
      %p175 = scmp.eq.s32.totalorder %s22, 1
      %p176 = por %p174, %p175
      %p178 = scmp.ne.s32.totalorder %s163, %s177
      %p179 = scmp.eq.s32.totalorder %s22, 0
      %p180 = por %p178, %p179
      %s182 = sadd.s32 %s181, 1
      %p185 = scmp.eq.s32.totalorder %s16, 1
      %p186 = scmp.ne.s32.totalorder %s181, %s183
      %p187 = scmp.eq.s32.totalorder %s16, 0
      %p188 = por %p186, %p187
      %p189 = scmp.ne.s32.totalorder %s181, %s183
      %p190 = scmp.eq.s32.totalorder %s21, 1
      %p191 = por %p189, %p190
      %p192 = scmp.ne.s32.totalorder %s183, %s184
      %p193 = scmp.eq.s32.totalorder %s21, 0
      %p194 = por %p192, %p193
      %p195 = scmp.ne.s32.totalorder %s183, %s184
      %p196 = scmp.eq.s32.totalorder %s22, 1
      %p197 = por %p195, %p196
      %p199 = scmp.ne.s32.totalorder %s184, %s198
      %p200 = scmp.eq.s32.totalorder %s22, 0
      %p201 = por %p199, %p200
      %s203 = sadd.s32 %s202, 1
      %p206 = scmp.eq.s32.totalorder %s16, 1
      %p207 = scmp.ne.s32.totalorder %s202, %s204
      %p208 = scmp.eq.s32.totalorder %s16, 0
      %p209 = por %p207, %p208
      %p210 = scmp.ne.s32.totalorder %s202, %s204
      %p211 = scmp.eq.s32.totalorder %s21, 1
      %p212 = por %p210, %p211
      %p213 = scmp.ne.s32.totalorder %s204, %s205
      %p214 = scmp.eq.s32.totalorder %s21, 0
      %p215 = por %p213, %p214
      %p216 = scmp.ne.s32.totalorder %s204, %s205
      %p217 = scmp.eq.s32.totalorder %s22, 1
      %p218 = por %p216, %p217
      %p220 = scmp.ne.s32.totalorder %s205, %s219
      %p221 = scmp.eq.s32.totalorder %s22, 0
      %p222 = por %p220, %p221
      %s223 = ssub.s32 %s16, %s23
      %p224 = scmp.eq.s32.totalorder %s223, 0
      %s226 = sadd.s32 %s225, 1
      %s227 = scalar_select %p224, %s225, %s226
      %p230 = pneg %p224
      %p231 = scmp.eq.s32.totalorder %s16, 1
      %p232 = por %p230, %p231
      %p233 = scmp.ne.s32.totalorder %s225, %s228
      %p234 = scmp.eq.s32.totalorder %s16, 0
      %p235 = por %p233, %p234
      %p236 = scmp.ne.s32.totalorder %s225, %s228
      %p237 = scmp.eq.s32.totalorder %s21, 1
      %p238 = por %p236, %p237
      %p239 = scmp.ne.s32.totalorder %s228, %s229
      %p240 = scmp.eq.s32.totalorder %s21, 0
      %p241 = por %p239, %p240
      %p242 = scmp.ne.s32.totalorder %s228, %s229
      %p243 = scmp.eq.s32.totalorder %s22, 1
      %p244 = por %p242, %p243
      %p246 = scmp.ne.s32.totalorder %s229, %s245
      %p247 = scmp.eq.s32.totalorder %s22, 0
      %p248 = por %p246, %p247
      %p249 = scmp.le.s32.totalorder 1, %s16
      %p250 = scmp.lt.s32.totalorder %s16, 3
      %p251 = pnand %p249, %p250
      %p252 = pneg %p251
      // Predicated region
      $region9: #{wav2vec2_forward.1} parent=5 // pred_check
        _
      $region10: #{wav2vec2_forward.1} parent=5 // pred_check_branch
        %254 = sbr.rel (%p251) target = $region12
      $region11: #{wav2vec2_forward.1} parent=5 // pred_region
        %s255 = ssub.s32 %s16, 1
        // Predicated region
        $region13: #{wav2vec2_forward.1} parent=11 // pred_check
          %p256 = pneg %p37
        $region14: #{wav2vec2_forward.1} parent=11 // pred_check_branch
          %258 = sbr.rel (%p256) target = $region16
        $region15: #{wav2vec2_forward.1} parent=11 // pred_region
          %s260 = ssub.s32 16, 16
          %261 = vsyncadd [#allocation3], %s260
          %s263 = sshll.u32 %s0, 4
          %s264 = int_to_ptr.vmem [resolvable:$true] %s263
          %266 = dma.vmem_to_smem %s264, 16, [#allocation2], [#allocation3]
        $region16: #{wav2vec2_forward.1} parent=11 // pred_fallthru
          _
        // Predicated region
        $region17: #{wav2vec2_forward.1} parent=11 // pred_check
          %p267 = pneg %p110
        $region18: #{wav2vec2_forward.1} parent=11 // pred_check_branch
          %269 = sbr.rel (%p267) target = $region20
        $region19: #{wav2vec2_forward.1} parent=11 // pred_region
          _
        $region20: #{wav2vec2_forward.1} parent=11 // pred_fallthru
          _
        // Predicated region
        $region21: #{wav2vec2_forward.1} parent=11 // pred_check
          %p270 = pneg %p131
        $region22: #{wav2vec2_forward.1} parent=11 // pred_check_branch
          %272 = sbr.rel (%p270) target = $region24
        $region23: #{wav2vec2_forward.1} parent=11 // pred_region
          _
        $region24: #{wav2vec2_forward.1} parent=11 // pred_fallthru
          _
        // Predicated region
        $region25: #{wav2vec2_forward.1} parent=11 // pred_check
          %p273 = pneg %p152
        $region26: #{wav2vec2_forward.1} parent=11 // pred_check_branch
          %275 = sbr.rel (%p273) target = $region28
        $region27: #{wav2vec2_forward.1} parent=11 // pred_region
          _
        $region28: #{wav2vec2_forward.1} parent=11 // pred_fallthru
          _
        // Predicated region
        $region29: #{wav2vec2_forward.1} parent=11 // pred_check
          %p276 = pneg %p173
        $region30: #{wav2vec2_forward.1} parent=11 // pred_check_branch
          %278 = sbr.rel (%p276) target = $region32
        $region31: #{wav2vec2_forward.1} parent=11 // pred_region
          _
        $region32: #{wav2vec2_forward.1} parent=11 // pred_fallthru
          _
        // Predicated region
        $region33: #{wav2vec2_forward.1} parent=11 // pred_check
          %p279 = pneg %p194
        $region34: #{wav2vec2_forward.1} parent=11 // pred_check_branch
          %281 = sbr.rel (%p279) target = $region36
        $region35: #{wav2vec2_forward.1} parent=11 // pred_region
          _
        $region36: #{wav2vec2_forward.1} parent=11 // pred_fallthru
          _
        // Predicated region
        $region37: #{wav2vec2_forward.1} parent=11 // pred_check
          %p282 = pneg %p215
        $region38: #{wav2vec2_forward.1} parent=11 // pred_check_branch
          %284 = sbr.rel (%p282) target = $region40
        $region39: #{wav2vec2_forward.1} parent=11 // pred_region
          _
        $region40: #{wav2vec2_forward.1} parent=11 // pred_fallthru
          _
      $region12: #{wav2vec2_forward.1} parent=5 // pred_fallthru
        _
      %p285 = scmp.lt.s32.totalorder %s16, 2
      // Predicated region
      $region41: #{wav2vec2_forward.1} parent=5 // pred_check
        %p286 = pneg %p285
      $region42: #{wav2vec2_forward.1} parent=5 // pred_check_branch
        %288 = sbr.rel (%p286) target = $region44
      $region43: #{wav2vec2_forward.1} parent=5 // pred_region
        // Predicated region
        $region45: #{wav2vec2_forward.1} parent=43 // pred_check
          %p289 = pneg %p57
        $region46: #{wav2vec2_forward.1} parent=43 // pred_check_branch
          %291 = sbr.rel (%p289) target = $region48
        $region47: #{wav2vec2_forward.1} parent=43 // pred_region
          %p292 = scmp.lt.s32.totalorder %s16, 1
          %s293 = scalar_select %p292, %s16, 1
          %s294 = smul.addr %s293, 2
          %s295 = smul.addr %s294, 8
          %s296 = scalar_lea.vmem %s1, %s295
        $region48: #{wav2vec2_forward.1} parent=43 // pred_fallthru
          _
        // Predicated region
        $region49: #{wav2vec2_forward.1} parent=43 // pred_check
          %p297 = pneg %p83
        $region50: #{wav2vec2_forward.1} parent=43 // pred_check_branch
          %299 = sbr.rel (%p297) target = $region52
        $region51: #{wav2vec2_forward.1} parent=43 // pred_region
          %p300 = scmp.lt.s32.totalorder %s16, 1
          %s301 = scalar_select %p300, %s16, 1
          %s302 = smul.addr %s301, 2
          %s303 = smul.addr %s302, 8
          %s304 = scalar_lea.vmem %s2, %s303
        $region52: #{wav2vec2_forward.1} parent=43 // pred_fallthru
          _
      $region44: #{wav2vec2_forward.1} parent=5 // pred_fallthru
        _
      %p305 = scmp.le.s32.totalorder 1, %s16
      %p306 = scmp.lt.s32.totalorder %s16, 3
      %p307 = pnand %p305, %p306
      %p308 = pneg %p307
      // Predicated region
      $region53: #{wav2vec2_forward.1} parent=5 // pred_check
        _
      $region54: #{wav2vec2_forward.1} parent=5 // pred_check_branch
        %310 = sbr.rel (%p307) target = $region56
      $region55: #{wav2vec2_forward.1} parent=5 // pred_region
        %s311 = ssub.s32 %s16, 1
        // Predicated region
        $region57: #{wav2vec2_forward.1} parent=55 // pred_check
          %p312 = pneg %p37
        $region58: #{wav2vec2_forward.1} parent=55 // pred_check_branch
          %314 = sbr.rel (%p312) target = $region60
        $region59: #{wav2vec2_forward.1} parent=55 // pred_region
          %315 = dma.done [#allocation3], 16
        $region60: #{wav2vec2_forward.1} parent=55 // pred_fallthru
          _
        %316 = sfence
        %p317 = pneg %p37
        %p318 = pneg %p34
        %p319 = scmp.lt.s32.totalorder %s21, 1
        %s320 = scalar_select %p319, %s21, 1
        %s321 = smul.addr %s320, 2
        %s322 = smul.addr %s321, 8
        %s323 = scalar_lea.vmem %s1, %s322
        %p324 = pneg %p63
        %p325 = pneg %p60
        %p326 = scmp.lt.s32.totalorder %s21, 1
        %s327 = scalar_select %p326, %s21, 1
        %s328 = smul.addr %s327, 2
        %s329 = smul.addr %s328, 8
        %s330 = scalar_lea.vmem %s2, %s329
        %p331 = pneg %p89
        %p332 = pneg %p86
        %p333 = pneg %p110
        %p334 = pneg %p107
        %p335 = pneg %p131
        %p336 = pneg %p128
        %p337 = pneg %p152
        %p338 = pneg %p149
        %p339 = pneg %p173
        %p340 = pneg %p170
        %p341 = pneg %p194
        %p342 = pneg %p191
        %p343 = pneg %p215
        %p344 = pneg %p212
        %p345 = pneg %p241
        %p346 = pneg %p238
        %p347 = scmp.lt.s32.totalorder %s21, 1
        %s348 = scalar_select %p347, %s21, 1
        %s349 = smul.addr %s348, 4
        %s350 = smul.addr %s349, 8
        %s351 = scalar_lea.vmem %s9, %s350
        %p352 = scmp.lt.s32.totalorder %s21, 1
        %s353 = scalar_select %p352, %s21, 1
        %s354 = smul.addr %s353, 2
        %s355 = smul.addr %s354, 8
        %s356 = scalar_lea.vmem %s1, %s355
        %p357 = scmp.lt.s32.totalorder %s21, 1
        %s358 = scalar_select %p357, %s21, 1
        %s359 = smul.addr %s358, 2
        %s360 = smul.addr %s359, 8
        %s361 = scalar_lea.vmem %s2, %s360
        %p362 = scmp.lt.s32.totalorder %s21, 1
        %s363 = scalar_select %p362, %s21, 1
        %s364 = smul.addr %s363, 4
        %s365 = smul.addr %s364, 8
        %s366 = scalar_lea.vmem %s9, %s365
        %v367 = vld [vmem:[%s3] sm:$0xff]
        %v368 = vld [vmem:[%s3 + $0x8] sm:$0xff]
        %v369 = vld [vmem:[%s3 + $0x10] sm:$0xff]
        %v370 = vld [vmem:[%s3 + $0x18] sm:$0xff]
        %v371 = vld [vmem:[%s4] sm:$0xff]
        %v372 = vld [vmem:[%s4 + $0x8] sm:$0xff]
        %v373 = vld [vmem:[%s4 + $0x10] sm:$0xff]
        %v374 = vld [vmem:[%s4 + $0x18] sm:$0xff]
        %v375 = vld [vmem:[%s5] sm:$0xff]
        %v376 = vld [vmem:[%s5 + $0x8] sm:$0xff]
        %v377 = vld [vmem:[%s5 + $0x10] sm:$0xff]
        %v378 = vld [vmem:[%s5 + $0x18] sm:$0xff]
        %s379 = scalar_lea.vmem %s5, 32
        %v380 = vld [vmem:[%s379] sm:$0xff]
        %v381 = vld [vmem:[%s379 + $0x8] sm:$0xff]
        %v382 = vld [vmem:[%s379 + $0x10] sm:$0xff]
        %v383 = vld [vmem:[%s379 + $0x18] sm:$0xff]
        %s384 = scalar_lea.vmem %s5, 64
        %v385 = vld [vmem:[%s384] sm:$0xff]
        %v386 = vld [vmem:[%s384 + $0x8] sm:$0xff]
        %v387 = vld [vmem:[%s384 + $0x10] sm:$0xff]
        %v388 = vld [vmem:[%s384 + $0x18] sm:$0xff]
        %v389 = vld [vmem:[%s6] sm:$0xff]
        %v390 = vld [vmem:[%s6 + $0x8] sm:$0xff]
        %v391 = vld [vmem:[%s6 + $0x10] sm:$0xff]
        %v392 = vld [vmem:[%s6 + $0x18] sm:$0xff]
        %v393 = vld [vmem:[%s7] sm:$0xff]
        %v394 = vld [vmem:[%s7 + $0x8] sm:$0xff]
        %v395 = vld [vmem:[%s7 + $0x10] sm:$0xff]
        %v396 = vld [vmem:[%s7 + $0x18] sm:$0xf]
        %v397 = vld [vmem:[%s8] sm:$0xff]
        %v398 = vld [vmem:[%s8 + $0x8] sm:$0xff]
        %v399 = vld [vmem:[%s8 + $0x10] sm:$0xff]
        %v400 = vld [vmem:[%s8 + $0x18] sm:$0xf]
        %v401 = vld [vmem:[%s356] sm:$0xff]
        %v402 = vld [vmem:[%s356 + $0x8] sm:$0x3]
        %v403 = vld [vmem:[%s361] sm:$0xff]
        %v404 = vld [vmem:[%s361 + $0x8] sm:$0x3]
        %s405 = sld [smem:[#allocation2]]
        %s406 = sld [smem:[#allocation2 + $0x1]]
        %v407 = vstv %s405
        %v408 = vmul.f32 %v401, %v407
        %v409 = vmul.f32 %v402, %v407
        %v410 = vstv %s406
        %v411 = vadd.f32 %v408, %v410
        %v412 = vadd.f32 %v409, %v410
        %v413 = vmul.f32 %v403, %v407
        %v414 = vmul.f32 %v404, %v407
        %v415 = vadd.f32 %v413, %v410
        %v416 = vadd.f32 %v414, %v410
        %418 = vset.pattern.permute.xlu0 0
        %419 = vperm.xlu0 %418, %v371
        %v420 = vpop.permute.xlu0 %419
        %423 = vset.pattern.permute.xlu0 0
        %424 = vperm.xlu0 %423, %v372
        %v425 = vpop.permute.xlu0 %424
        %428 = vset.pattern.permute.xlu0 0
        %429 = vperm.xlu0 %428, %v373
        %v430 = vpop.permute.xlu0 %429
        %433 = vset.pattern.permute.xlu0 0
        %434 = vperm.xlu0 %433, %v374
        %v435 = vpop.permute.xlu0 %434
        %vm437 = vcmask 80896
        %v439 = vsel %vm437, %v367, 0
        %v442 = vsel %vm437, %v368, 0
        %v445 = vsel %vm437, %v369, 0
        %v448 = vsel %vm437, %v370, 0
        %vm450 = vcmask 1041408
        %v452 = vsel %vm450, %v412, 0
        %454 = vmatprep.subr.mxu0 0.0
        %455 = vmatpush1.msra.mxu0 0.0
        %456 = vmatprep.subr.mxu0 0.0
        %457 = vmatpush1.msra.mxu0 0.0
        %458 = vmatprep.subr.mxu0 0.0
        %459 = vmatpush1.msra.mxu0 0.0
        %460 = vmatprep.subr.mxu0 0.0
        %461 = vmatpush1.msra.mxu0 0.0
        %462 = vmatprep.subr.mxu0 0.0
        %463 = vmatpush1.msra.mxu0 0.0
        %464 = vmatprep.subr.mxu0 0.0
        %465 = vmatpush1.msra.mxu0 0.0
        %466 = vmatprep.subr.mxu0 0.0
        %467 = vmatpush1.msra.mxu0 0.0
        %468 = vmatprep.subr.mxu0 0.0
        %469 = vmatpush1.msra.mxu0 0.0
        %470 = vmatprep.subr.mxu0 0.0
        %471 = vmatpush1.msra.mxu0 0.0
        %472 = vmatprep.subr.mxu0 0.0
        %473 = vmatpush1.msra.mxu0 0.0
        %474 = vmatprep.subr.mxu0 0.0
        %475 = vmatpush1.msra.mxu0 0.0
        %476 = vmatprep.subr.mxu0 0.0
        %477 = vmatpush1.msra.mxu0 0.0
        %478 = vmatprep.subr.mxu0 0.0
        %479 = vmatpush1.msra.mxu0 0.0
        %480 = vmatprep.subr.mxu0 0.0
        %481 = vmatpush1.msra.mxu0 0.0
        %482 = vmatprep.subr.mxu0 0.0
        %483 = vmatpush1.msra.mxu0 %v452
        %484 = vmatprep.subr.mxu0 0.0
        %485 = vmatpush1.msra.mxu0 %v411
        %486 = vmatprep.subr.mxu0 0.0
        %487 = vmatpush2.msra.mxu0 0.0
        %488 = vmatprep.subr.mxu0 0.0
        %489 = vmatpush2.msra.mxu0 0.0
        %490 = vmatprep.subr.mxu0 0.0
        %491 = vmatpush2.msra.mxu0 0.0
        %492 = vmatprep.subr.mxu0 0.0
        %493 = vmatpush2.msra.mxu0 0.0
        %494 = vmatprep.subr.mxu0 0.0
        %495 = vmatpush2.msra.mxu0 0.0
        %496 = vmatprep.subr.mxu0 0.0
        %497 = vmatpush2.msra.mxu0 0.0
        %498 = vmatprep.subr.mxu0 0.0
        %499 = vmatpush2.msra.mxu0 0.0
        %500 = vmatprep.subr.mxu0 0.0
        %501 = vmatpush2.msra.mxu0 0.0
        %502 = vmatprep.subr.mxu0 0.0
        %503 = vmatpush2.msra.mxu0 0.0
        %504 = vmatprep.subr.mxu0 0.0
        %505 = vmatpush2.msra.mxu0 0.0
        %506 = vmatprep.subr.mxu0 0.0
        %507 = vmatpush2.msra.mxu0 0.0
        %508 = vmatprep.subr.mxu0 0.0
        %509 = vmatpush2.msra.mxu0 0.0
        %510 = vmatprep.subr.mxu0 0.0
        %511 = vmatpush2.msra.mxu0 0.0
        %512 = vmatprep.subr.mxu0 0.0
        %513 = vmatpush2.msra.mxu0 0.0
        %514 = vmatprep.subr.mxu0 0.0
        %515 = vmatpush2.msra.mxu0 0.0
        %516 = vmatprep.subr.mxu0 0.0
        %517 = vmatpush2.msra.mxu0 0.0
        %518 = vmatprep.mubr.f32.mxu0 0.0
        %519 = vmatmul.mubr.f32.gmra.mxu0 %v439
        %v520 = vpop.f32.mrf.mxu0
        %v521 = vadd.f32 %v420, %v520
        %v522 = vpop.f32.mrf.mxu0
        %523 = vmatprep.mubr.f32.mxu0 0.0
        %524 = vmatmul.mubr.f32.gmra.mxu0 %v442
        %v525 = vpop.f32.mrf.mxu0
        %v526 = vadd.f32 %v425, %v525
        %v527 = vpop.f32.mrf.mxu0
        %528 = vmatprep.mubr.f32.mxu0 0.0
        %529 = vmatmul.mubr.f32.gmra.mxu0 %v445
        %v530 = vpop.f32.mrf.mxu0
        %v531 = vadd.f32 %v430, %v530
        %v532 = vpop.f32.mrf.mxu0
        %533 = vmatprep.mubr.f32.mxu0 0.0
        %534 = vmatmul.mubr.f32.gmra.mxu0 %v448
        %v535 = vpop.f32.mrf.mxu0
        %v536 = vadd.f32 %v435, %v535
        %v537 = vpop.f32.mrf.mxu0
        %538 = vdwg.mxu0
        %v539 = vmul.f32 %v521, 0.5
        %v540 = vmul.f32 %v526, 0.5
        %v541 = vmul.f32 %v531, 0.5
        %v542 = vmul.f32 %v536, 0.5
        %v543 = vmul.f32 %v521, 0.044715
        %v544 = vmul.f32 %v526, 0.044715
        %v545 = vmul.f32 %v531, 0.044715
        %v546 = vmul.f32 %v536, 0.044715
        %v547 = vmul.f32 %v543, %v521
        %v548 = vmul.f32 %v544, %v526
        %v549 = vmul.f32 %v545, %v531
        %v550 = vmul.f32 %v546, %v536
        %v551 = vmul.f32 %v547, %v521
        %v552 = vmul.f32 %v548, %v526
        %v553 = vmul.f32 %v549, %v531
        %v554 = vmul.f32 %v550, %v536
        %v555 = vadd.f32 %v521, %v551
        %v556 = vadd.f32 %v526, %v552
        %v557 = vadd.f32 %v531, %v553
        %v558 = vadd.f32 %v536, %v554
        %v559 = vmul.f32 %v555, 0.7978846
        %v560 = vmul.f32 %v556, 0.7978846
        %v561 = vmul.f32 %v557, 0.7978846
        %v562 = vmul.f32 %v558, 0.7978846
        %v563 = vtanh.pop %v559
        %v564 = vtanh.pop %v560
        %v565 = vtanh.pop %v561
        %v566 = vtanh.pop %v562
        %v567 = vadd.f32 %v563, 1.0
        %v568 = vadd.f32 %v564, 1.0
        %v569 = vadd.f32 %v565, 1.0
        %v570 = vadd.f32 %v566, 1.0
        %v571 = vmul.f32 %v539, %v567
        %v572 = vmul.f32 %v540, %v568
        %v573 = vmul.f32 %v541, %v569
        %v574 = vmul.f32 %v542, %v570
        %v576 = vsel %vm450, %v416, 0
        %578 = vmatprep.subr.mxu0 0.0
        %579 = vmatpush1.msra.mxu0 0.0
        %580 = vmatprep.subr.mxu0 0.0
        %581 = vmatpush1.msra.mxu0 0.0
        %582 = vmatprep.subr.mxu0 0.0
        %583 = vmatpush1.msra.mxu0 0.0
        %584 = vmatprep.subr.mxu0 0.0
        %585 = vmatpush1.msra.mxu0 0.0
        %586 = vmatprep.subr.mxu0 0.0
        %587 = vmatpush1.msra.mxu0 0.0
        %588 = vmatprep.subr.mxu0 0.0
        %589 = vmatpush1.msra.mxu0 0.0
        %590 = vmatprep.subr.mxu0 0.0
        %591 = vmatpush1.msra.mxu0 0.0
        %592 = vmatprep.subr.mxu0 0.0
        %593 = vmatpush1.msra.mxu0 0.0
        %594 = vmatprep.subr.mxu0 0.0
        %595 = vmatpush1.msra.mxu0 0.0
        %596 = vmatprep.subr.mxu0 0.0
        %597 = vmatpush1.msra.mxu0 0.0
        %598 = vmatprep.subr.mxu0 0.0
        %599 = vmatpush1.msra.mxu0 0.0
        %600 = vmatprep.subr.mxu0 0.0
        %601 = vmatpush1.msra.mxu0 0.0
        %602 = vmatprep.subr.mxu0 0.0
        %603 = vmatpush1.msra.mxu0 0.0
        %604 = vmatprep.subr.mxu0 0.0
        %605 = vmatpush1.msra.mxu0 0.0
        %606 = vmatprep.subr.mxu0 0.0
        %607 = vmatpush1.msra.mxu0 %v576
        %608 = vmatprep.subr.mxu0 0.0
        %609 = vmatpush1.msra.mxu0 %v415
        %610 = vmatprep.subr.mxu0 0.0
        %611 = vmatpush2.msra.mxu0 0.0
        %612 = vmatprep.subr.mxu0 0.0
        %613 = vmatpush2.msra.mxu0 0.0
        %614 = vmatprep.subr.mxu0 0.0
        %615 = vmatpush2.msra.mxu0 0.0
        %616 = vmatprep.subr.mxu0 0.0
        %617 = vmatpush2.msra.mxu0 0.0
        %618 = vmatprep.subr.mxu0 0.0
        %619 = vmatpush2.msra.mxu0 0.0
        %620 = vmatprep.subr.mxu0 0.0
        %621 = vmatpush2.msra.mxu0 0.0
        %622 = vmatprep.subr.mxu0 0.0
        %623 = vmatpush2.msra.mxu0 0.0
        %624 = vmatprep.subr.mxu0 0.0
        %625 = vmatpush2.msra.mxu0 0.0
        %626 = vmatprep.subr.mxu0 0.0
        %627 = vmatpush2.msra.mxu0 0.0
        %628 = vmatprep.subr.mxu0 0.0
        %629 = vmatpush2.msra.mxu0 0.0
        %630 = vmatprep.subr.mxu0 0.0
        %631 = vmatpush2.msra.mxu0 0.0
        %632 = vmatprep.subr.mxu0 0.0
        %633 = vmatpush2.msra.mxu0 0.0
        %634 = vmatprep.subr.mxu0 0.0
        %635 = vmatpush2.msra.mxu0 0.0
        %636 = vmatprep.subr.mxu0 0.0
        %637 = vmatpush2.msra.mxu0 0.0
        %638 = vmatprep.subr.mxu0 0.0
        %639 = vmatpush2.msra.mxu0 0.0
        %640 = vmatprep.subr.mxu0 0.0
        %641 = vmatpush2.msra.mxu0 0.0
        %642 = vmatprep.mubr.f32.mxu0 0.0
        %643 = vmatmul.mubr.f32.gmra.mxu0 %v439
        %v644 = vpop.f32.mrf.mxu0
        %v645 = vadd.f32 %v420, %v644
        %v646 = vpop.f32.mrf.mxu0
        %647 = vmatprep.mubr.f32.mxu0 0.0
        %648 = vmatmul.mubr.f32.gmra.mxu0 %v442
        %v649 = vpop.f32.mrf.mxu0
        %v650 = vadd.f32 %v425, %v649
        %v651 = vpop.f32.mrf.mxu0
        %652 = vmatprep.mubr.f32.mxu0 0.0
        %653 = vmatmul.mubr.f32.gmra.mxu0 %v445
        %v654 = vpop.f32.mrf.mxu0
        %v655 = vadd.f32 %v430, %v654
        %v656 = vpop.f32.mrf.mxu0
        %657 = vmatprep.mubr.f32.mxu0 0.0
        %658 = vmatmul.mubr.f32.gmra.mxu0 %v448
        %v659 = vpop.f32.mrf.mxu0
        %v660 = vadd.f32 %v435, %v659
        %v661 = vpop.f32.mrf.mxu0
        %662 = vdwg.mxu0
        %v663 = vmul.f32 %v645, 0.5
        %v664 = vmul.f32 %v650, 0.5
        %v665 = vmul.f32 %v655, 0.5
        %v666 = vmul.f32 %v660, 0.5
        %v667 = vmul.f32 %v645, 0.044715
        %v668 = vmul.f32 %v650, 0.044715
        %v669 = vmul.f32 %v655, 0.044715
        %v670 = vmul.f32 %v660, 0.044715
        %v671 = vmul.f32 %v667, %v645
        %v672 = vmul.f32 %v668, %v650
        %v673 = vmul.f32 %v669, %v655
        %v674 = vmul.f32 %v670, %v660
        %v675 = vmul.f32 %v671, %v645
        %v676 = vmul.f32 %v672, %v650
        %v677 = vmul.f32 %v673, %v655
        %v678 = vmul.f32 %v674, %v660
        %v679 = vadd.f32 %v645, %v675
        %v680 = vadd.f32 %v650, %v676
        %v681 = vadd.f32 %v655, %v677
        %v682 = vadd.f32 %v660, %v678
        %v683 = vmul.f32 %v679, 0.7978846
        %v684 = vmul.f32 %v680, 0.7978846
        %v685 = vmul.f32 %v681, 0.7978846
        %v686 = vmul.f32 %v682, 0.7978846
        %v687 = vtanh.pop %v683
        %v688 = vtanh.pop %v684
        %v689 = vtanh.pop %v685
        %v690 = vtanh.pop %v686
        %v691 = vadd.f32 %v687, 1.0
        %v692 = vadd.f32 %v688, 1.0
        %v693 = vadd.f32 %v689, 1.0
        %v694 = vadd.f32 %v690, 1.0
        %v695 = vmul.f32 %v663, %v691
        %v696 = vmul.f32 %v664, %v692
        %v697 = vmul.f32 %v665, %v693
        %v698 = vmul.f32 %v666, %v694
        %vm699 = vcmask 261120
        %v701 = vsel %vm699, %v380, 0
        %v704 = vsel %vm699, %v381, 0
        %v707 = vsel %vm699, %v382, 0
        %v710 = vsel %vm699, %v383, 0
        %712 = vmatprep.subr.mxu0 0.0
        %713 = vmatpush1.msra.mxu0 0.0
        %714 = vmatprep.subr.mxu0 0.0
        %715 = vmatpush1.msra.mxu0 0.0
        %716 = vmatprep.subr.mxu0 0.0
        %717 = vmatpush1.msra.mxu0 0.0
        %718 = vmatprep.subr.mxu0 0.0
        %719 = vmatpush1.msra.mxu0 0.0
        %720 = vmatprep.subr.mxu0 0.0
        %721 = vmatpush1.msra.mxu0 0.0
        %722 = vmatprep.subr.mxu0 0.0
        %723 = vmatpush1.msra.mxu0 0.0
        %724 = vmatprep.subr.mxu0 0.0
        %725 = vmatpush1.msra.mxu0 0.0
        %726 = vmatprep.subr.mxu0 0.0
        %727 = vmatpush1.msra.mxu0 0.0
        %728 = vmatprep.subr.mxu0 0.0
        %729 = vmatpush1.msra.mxu0 0.0
        %730 = vmatprep.subr.mxu0 0.0
        %731 = vmatpush1.msra.mxu0 0.0
        %732 = vmatprep.subr.mxu0 0.0
        %733 = vmatpush1.msra.mxu0 0.0
        %734 = vmatprep.subr.mxu0 0.0
        %735 = vmatpush1.msra.mxu0 0.0
        %736 = vmatprep.subr.mxu0 0.0
        %737 = vmatpush1.msra.mxu0 %v698
        %738 = vmatprep.subr.mxu0 0.0
        %739 = vmatpush1.msra.mxu0 %v697
        %740 = vmatprep.subr.mxu0 0.0
        %741 = vmatpush1.msra.mxu0 %v696
        %742 = vmatprep.subr.mxu0 0.0
        %743 = vmatpush1.msra.mxu0 %v695
        %744 = vmatprep.subr.mxu0 0.0
        %745 = vmatpush2.msra.mxu0 0.0
        %746 = vmatprep.subr.mxu0 0.0
        %747 = vmatpush2.msra.mxu0 0.0
        %748 = vmatprep.subr.mxu0 0.0
        %749 = vmatpush2.msra.mxu0 0.0
        %750 = vmatprep.subr.mxu0 0.0
        %751 = vmatpush2.msra.mxu0 0.0
        %752 = vmatprep.subr.mxu0 0.0
        %753 = vmatpush2.msra.mxu0 0.0
        %754 = vmatprep.subr.mxu0 0.0
        %755 = vmatpush2.msra.mxu0 0.0
        %756 = vmatprep.subr.mxu0 0.0
        %757 = vmatpush2.msra.mxu0 0.0
        %758 = vmatprep.subr.mxu0 0.0
        %759 = vmatpush2.msra.mxu0 0.0
        %760 = vmatprep.subr.mxu0 0.0
        %761 = vmatpush2.msra.mxu0 0.0
        %762 = vmatprep.subr.mxu0 0.0
        %763 = vmatpush2.msra.mxu0 0.0
        %764 = vmatprep.subr.mxu0 0.0
        %765 = vmatpush2.msra.mxu0 0.0
        %766 = vmatprep.subr.mxu0 0.0
        %767 = vmatpush2.msra.mxu0 0.0
        %768 = vmatprep.subr.mxu0 0.0
        %769 = vmatpush2.msra.mxu0 0.0
        %770 = vmatprep.subr.mxu0 0.0
        %771 = vmatpush2.msra.mxu0 0.0
        %772 = vmatprep.subr.mxu0 0.0
        %773 = vmatpush2.msra.mxu0 0.0
        %774 = vmatprep.subr.mxu0 0.0
        %775 = vmatpush2.msra.mxu0 0.0
        %776 = vmatprep.mubr.f32.mxu0 0.0
        %777 = vmatmul.mubr.f32.gmra.mxu0 %v701
        %v778 = vpop.f32.mrf.mxu0
        %v779 = vadd.f32 0.0, %v778
        %v780 = vpop.f32.mrf.mxu0
        %781 = vmatprep.mubr.f32.mxu0 0.0
        %782 = vmatmul.mubr.f32.gmra.mxu0 %v704
        %v783 = vpop.f32.mrf.mxu0
        %v784 = vadd.f32 0.0, %v783
        %v785 = vpop.f32.mrf.mxu0
        %786 = vmatprep.mubr.f32.mxu0 0.0
        %787 = vmatmul.mubr.f32.gmra.mxu0 %v707
        %v788 = vpop.f32.mrf.mxu0
        %v789 = vadd.f32 0.0, %v788
        %v790 = vpop.f32.mrf.mxu0
        %791 = vmatprep.mubr.f32.mxu0 0.0
        %792 = vmatmul.mubr.f32.gmra.mxu0 %v710
        %v793 = vpop.f32.mrf.mxu0
        %v794 = vadd.f32 0.0, %v793
        %v795 = vpop.f32.mrf.mxu0
        %796 = vdwg.mxu0
        %v798 = vsel %vm699, %v375, 0
        %v801 = vsel %vm699, %v376, 0
        %v804 = vsel %vm699, %v377, 0
        %v807 = vsel %vm699, %v378, 0
        %809 = vmatprep.subr.mxu0 0.0
        %810 = vmatpush1.msra.mxu0 0.0
        %811 = vmatprep.subr.mxu0 0.0
        %812 = vmatpush1.msra.mxu0 0.0
        %813 = vmatprep.subr.mxu0 0.0
        %814 = vmatpush1.msra.mxu0 0.0
        %815 = vmatprep.subr.mxu0 0.0
        %816 = vmatpush1.msra.mxu0 0.0
        %817 = vmatprep.subr.mxu0 0.0
        %818 = vmatpush1.msra.mxu0 0.0
        %819 = vmatprep.subr.mxu0 0.0
        %820 = vmatpush1.msra.mxu0 0.0
        %821 = vmatprep.subr.mxu0 0.0
        %822 = vmatpush1.msra.mxu0 0.0
        %823 = vmatprep.subr.mxu0 0.0
        %824 = vmatpush1.msra.mxu0 0.0
        %825 = vmatprep.subr.mxu0 0.0
        %826 = vmatpush1.msra.mxu0 0.0
        %827 = vmatprep.subr.mxu0 0.0
        %828 = vmatpush1.msra.mxu0 0.0
        %829 = vmatprep.subr.mxu0 0.0
        %830 = vmatpush1.msra.mxu0 0.0
        %831 = vmatprep.subr.mxu0 0.0
        %832 = vmatpush1.msra.mxu0 0.0
        %833 = vmatprep.subr.mxu0 0.0
        %834 = vmatpush1.msra.mxu0 %v574
        %835 = vmatprep.subr.mxu0 0.0
        %836 = vmatpush1.msra.mxu0 %v573
        %837 = vmatprep.subr.mxu0 0.0
        %838 = vmatpush1.msra.mxu0 %v572
        %839 = vmatprep.subr.mxu0 0.0
        %840 = vmatpush1.msra.mxu0 %v571
        %841 = vmatprep.subr.mxu0 0.0
        %842 = vmatpush2.msra.mxu0 0.0
        %843 = vmatprep.subr.mxu0 0.0
        %844 = vmatpush2.msra.mxu0 0.0
        %845 = vmatprep.subr.mxu0 0.0
        %846 = vmatpush2.msra.mxu0 0.0
        %847 = vmatprep.subr.mxu0 0.0
        %848 = vmatpush2.msra.mxu0 0.0
        %849 = vmatprep.subr.mxu0 0.0
        %850 = vmatpush2.msra.mxu0 0.0
        %851 = vmatprep.subr.mxu0 0.0
        %852 = vmatpush2.msra.mxu0 0.0
        %853 = vmatprep.subr.mxu0 0.0
        %854 = vmatpush2.msra.mxu0 0.0
        %855 = vmatprep.subr.mxu0 0.0
        %856 = vmatpush2.msra.mxu0 0.0
        %857 = vmatprep.subr.mxu0 0.0
        %858 = vmatpush2.msra.mxu0 0.0
        %859 = vmatprep.subr.mxu0 0.0
        %860 = vmatpush2.msra.mxu0 0.0
        %861 = vmatprep.subr.mxu0 0.0
        %862 = vmatpush2.msra.mxu0 0.0
        %863 = vmatprep.subr.mxu0 0.0
        %864 = vmatpush2.msra.mxu0 0.0
        %865 = vmatprep.subr.mxu0 0.0
        %866 = vmatpush2.msra.mxu0 0.0
        %867 = vmatprep.subr.mxu0 0.0
        %868 = vmatpush2.msra.mxu0 0.0
        %869 = vmatprep.subr.mxu0 0.0
        %870 = vmatpush2.msra.mxu0 0.0
        %871 = vmatprep.subr.mxu0 0.0
        %872 = vmatpush2.msra.mxu0 0.0
        %873 = vmatprep.mubr.f32.mxu0 0.0
        %874 = vmatmul.mubr.f32.gmra.mxu0 %v798
        %v875 = vpop.f32.mrf.mxu0
        %v876 = vadd.f32 %v779, %v875
        %v877 = vpop.f32.mrf.mxu0
        %878 = vmatprep.mubr.f32.mxu0 0.0
        %879 = vmatmul.mubr.f32.gmra.mxu0 %v801
        %v880 = vpop.f32.mrf.mxu0
        %v881 = vadd.f32 %v784, %v880
        %v882 = vpop.f32.mrf.mxu0
        %883 = vmatprep.mubr.f32.mxu0 0.0
        %884 = vmatmul.mubr.f32.gmra.mxu0 %v804
        %v885 = vpop.f32.mrf.mxu0
        %v886 = vadd.f32 %v789, %v885
        %v887 = vpop.f32.mrf.mxu0
        %888 = vmatprep.mubr.f32.mxu0 0.0
        %889 = vmatmul.mubr.f32.gmra.mxu0 %v807
        %v890 = vpop.f32.mrf.mxu0
        %v891 = vadd.f32 %v794, %v890
        %v892 = vpop.f32.mrf.mxu0
        %893 = vdwg.mxu0
        %898 = vrot.lane.b32.xlu0 %v571, 127
        %v899 = vpop.permute.xlu0 %898
        %900 = vrot.lane.b32.xlu0 %v572, 127
        %v901 = vpop.permute.xlu0 %900
        %902 = vrot.lane.b32.xlu0 %v573, 127
        %v903 = vpop.permute.xlu0 %902
        %904 = vrot.lane.b32.xlu0 %v574, 127
        %v905 = vpop.permute.xlu0 %904
        %v911 = vsel %vm699, %v385, 0
        %v914 = vsel %vm699, %v386, 0
        %v917 = vsel %vm699, %v387, 0
        %v920 = vsel %vm699, %v388, 0
        %922 = vmatprep.subr.mxu0 0.0
        %923 = vmatpush1.msra.mxu0 0.0
        %924 = vmatprep.subr.mxu0 0.0
        %925 = vmatpush1.msra.mxu0 0.0
        %926 = vmatprep.subr.mxu0 0.0
        %927 = vmatpush1.msra.mxu0 0.0
        %928 = vmatprep.subr.mxu0 0.0
        %929 = vmatpush1.msra.mxu0 0.0
        %930 = vmatprep.subr.mxu0 0.0
        %931 = vmatpush1.msra.mxu0 0.0
        %932 = vmatprep.subr.mxu0 0.0
        %933 = vmatpush1.msra.mxu0 0.0
        %934 = vmatprep.subr.mxu0 0.0
        %935 = vmatpush1.msra.mxu0 0.0
        %936 = vmatprep.subr.mxu0 0.0
        %937 = vmatpush1.msra.mxu0 0.0
        %938 = vmatprep.subr.mxu0 0.0
        %939 = vmatpush1.msra.mxu0 0.0
        %940 = vmatprep.subr.mxu0 0.0
        %941 = vmatpush1.msra.mxu0 0.0
        %942 = vmatprep.subr.mxu0 0.0
        %943 = vmatpush1.msra.mxu0 0.0
        %944 = vmatprep.subr.mxu0 0.0
        %945 = vmatpush1.msra.mxu0 0.0
        %946 = vmatprep.subr.mxu0 0.0
        %947 = vmatpush1.msra.mxu0 %v905
        %948 = vmatprep.subr.mxu0 0.0
        %949 = vmatpush1.msra.mxu0 %v903
        %950 = vmatprep.subr.mxu0 0.0
        %951 = vmatpush1.msra.mxu0 %v901
        %952 = vmatprep.subr.mxu0 0.0
        %953 = vmatpush1.msra.mxu0 %v899
        %954 = vmatprep.subr.mxu0 0.0
        %955 = vmatpush2.msra.mxu0 0.0
        %956 = vmatprep.subr.mxu0 0.0
        %957 = vmatpush2.msra.mxu0 0.0
        %958 = vmatprep.subr.mxu0 0.0
        %959 = vmatpush2.msra.mxu0 0.0
        %960 = vmatprep.subr.mxu0 0.0
        %961 = vmatpush2.msra.mxu0 0.0
        %962 = vmatprep.subr.mxu0 0.0
        %963 = vmatpush2.msra.mxu0 0.0
        %964 = vmatprep.subr.mxu0 0.0
        %965 = vmatpush2.msra.mxu0 0.0
        %966 = vmatprep.subr.mxu0 0.0
        %967 = vmatpush2.msra.mxu0 0.0
        %968 = vmatprep.subr.mxu0 0.0
        %969 = vmatpush2.msra.mxu0 0.0
        %970 = vmatprep.subr.mxu0 0.0
        %971 = vmatpush2.msra.mxu0 0.0
        %972 = vmatprep.subr.mxu0 0.0
        %973 = vmatpush2.msra.mxu0 0.0
        %974 = vmatprep.subr.mxu0 0.0
        %975 = vmatpush2.msra.mxu0 0.0
        %976 = vmatprep.subr.mxu0 0.0
        %977 = vmatpush2.msra.mxu0 0.0
        %978 = vmatprep.subr.mxu0 0.0
        %979 = vmatpush2.msra.mxu0 0.0
        %980 = vmatprep.subr.mxu0 0.0
        %981 = vmatpush2.msra.mxu0 0.0
        %982 = vmatprep.subr.mxu0 0.0
        %983 = vmatpush2.msra.mxu0 0.0
        %984 = vmatprep.subr.mxu0 0.0
        %985 = vmatpush2.msra.mxu0 0.0
        %986 = vmatprep.mubr.f32.mxu0 0.0
        %987 = vmatmul.mubr.f32.gmra.mxu0 %v911
        %v988 = vpop.f32.mrf.mxu0
        %v989 = vadd.f32 0.0, %v988
        %v990 = vpop.f32.mrf.mxu0
        %991 = vmatprep.mubr.f32.mxu0 0.0
        %992 = vmatmul.mubr.f32.gmra.mxu0 %v914
        %v993 = vpop.f32.mrf.mxu0
        %v994 = vadd.f32 0.0, %v993
        %v995 = vpop.f32.mrf.mxu0
        %996 = vmatprep.mubr.f32.mxu0 0.0
        %997 = vmatmul.mubr.f32.gmra.mxu0 %v917
        %v998 = vpop.f32.mrf.mxu0
        %v999 = vadd.f32 0.0, %v998
        %v1000 = vpop.f32.mrf.mxu0
        %1001 = vmatprep.mubr.f32.mxu0 0.0
        %1002 = vmatmul.mubr.f32.gmra.mxu0 %v920
        %v1003 = vpop.f32.mrf.mxu0
        %v1004 = vadd.f32 0.0, %v1003
        %v1005 = vpop.f32.mrf.mxu0
        %1006 = vdwg.mxu0
        %v1007 = vadd.f32 %v876, %v989
        %v1008 = vadd.f32 %v881, %v994
        %v1009 = vadd.f32 %v886, %v999
        %v1010 = vadd.f32 %v891, %v1004
        %1012 = vset.pattern.permute.xlu0 0
        %1013 = vperm.xlu0 %1012, %v389
        %v1014 = vpop.permute.xlu0 %1013
        %1017 = vset.pattern.permute.xlu0 0
        %1018 = vperm.xlu0 %1017, %v390
        %v1019 = vpop.permute.xlu0 %1018
        %1022 = vset.pattern.permute.xlu0 0
        %1023 = vperm.xlu0 %1022, %v391
        %v1024 = vpop.permute.xlu0 %1023
        %1027 = vset.pattern.permute.xlu0 0
        %1028 = vperm.xlu0 %1027, %v392
        %v1029 = vpop.permute.xlu0 %1028
        %v1031 = vadd.f32 %v1007, %v1014
        %v1032 = vadd.f32 %v1008, %v1019
        %v1033 = vadd.f32 %v1009, %v1024
        %v1034 = vadd.f32 %v1010, %v1029
        %v1035 = vmul.f32 %v1031, 0.5
        %v1036 = vmul.f32 %v1032, 0.5
        %v1037 = vmul.f32 %v1033, 0.5
        %v1038 = vmul.f32 %v1034, 0.5
        %v1039 = vmul.f32 %v1031, 0.044715
        %v1040 = vmul.f32 %v1032, 0.044715
        %v1041 = vmul.f32 %v1033, 0.044715
        %v1042 = vmul.f32 %v1034, 0.044715
        %v1043 = vmul.f32 %v1039, %v1031
        %v1044 = vmul.f32 %v1040, %v1032
        %v1045 = vmul.f32 %v1041, %v1033
        %v1046 = vmul.f32 %v1042, %v1034
        %v1047 = vmul.f32 %v1043, %v1031
        %v1048 = vmul.f32 %v1044, %v1032
        %v1049 = vmul.f32 %v1045, %v1033
        %v1050 = vmul.f32 %v1046, %v1034
        %v1051 = vadd.f32 %v1031, %v1047
        %v1052 = vadd.f32 %v1032, %v1048
        %v1053 = vadd.f32 %v1033, %v1049
        %v1054 = vadd.f32 %v1034, %v1050
        %v1055 = vmul.f32 %v1051, 0.7978846
        %v1056 = vmul.f32 %v1052, 0.7978846
        %v1057 = vmul.f32 %v1053, 0.7978846
        %v1058 = vmul.f32 %v1054, 0.7978846
        %v1059 = vtanh.pop %v1055
        %v1060 = vtanh.pop %v1056
        %v1061 = vtanh.pop %v1057
        %v1062 = vtanh.pop %v1058
        %v1063 = vadd.f32 %v1059, 1.0
        %v1064 = vadd.f32 %v1060, 1.0
        %v1065 = vadd.f32 %v1061, 1.0
        %v1066 = vadd.f32 %v1062, 1.0
        %v1067 = vmul.f32 %v1035, %v1063
        %v1068 = vmul.f32 %v1036, %v1064
        %v1069 = vmul.f32 %v1037, %v1065
        %v1070 = vmul.f32 %v1038, %v1066
        %1072 = vset.pattern.permute.xlu0 0
        %1073 = vperm.xlu0 %1072, %v397
        %v1074 = vpop.permute.xlu0 %1073
        %1077 = vset.pattern.permute.xlu0 0
        %1078 = vperm.xlu0 %1077, %v398
        %v1079 = vpop.permute.xlu0 %1078
        %1082 = vset.pattern.permute.xlu0 0
        %1083 = vperm.xlu0 %1082, %v399
        %v1084 = vpop.permute.xlu0 %1083
        %1087 = vset.pattern.permute.xlu0 0
        %1088 = vperm.xlu0 %1087, %v400
        %v1089 = vpop.permute.xlu0 %1088
        %v1092 = vsel %vm699, %v393, 0
        %v1095 = vsel %vm699, %v394, 0
        %v1098 = vsel %vm699, %v395, 0
        %v1101 = vsel %vm699, %v396, 0
        %1103 = vmatprep.subr.mxu0 0.0
        %1104 = vmatpush1.msra.mxu0 0.0
        %1105 = vmatprep.subr.mxu0 0.0
        %1106 = vmatpush1.msra.mxu0 0.0
        %1107 = vmatprep.subr.mxu0 0.0
        %1108 = vmatpush1.msra.mxu0 0.0
        %1109 = vmatprep.subr.mxu0 0.0
        %1110 = vmatpush1.msra.mxu0 0.0
        %1111 = vmatprep.subr.mxu0 0.0
        %1112 = vmatpush1.msra.mxu0 0.0
        %1113 = vmatprep.subr.mxu0 0.0
        %1114 = vmatpush1.msra.mxu0 0.0
        %1115 = vmatprep.subr.mxu0 0.0
        %1116 = vmatpush1.msra.mxu0 0.0
        %1117 = vmatprep.subr.mxu0 0.0
        %1118 = vmatpush1.msra.mxu0 0.0
        %1119 = vmatprep.subr.mxu0 0.0
        %1120 = vmatpush1.msra.mxu0 0.0
        %1121 = vmatprep.subr.mxu0 0.0
        %1122 = vmatpush1.msra.mxu0 0.0
        %1123 = vmatprep.subr.mxu0 0.0
        %1124 = vmatpush1.msra.mxu0 0.0
        %1125 = vmatprep.subr.mxu0 0.0
        %1126 = vmatpush1.msra.mxu0 0.0
        %1127 = vmatprep.subr.mxu0 0.0
        %1128 = vmatpush1.msra.mxu0 %v1070
        %1129 = vmatprep.subr.mxu0 0.0
        %1130 = vmatpush1.msra.mxu0 %v1069
        %1131 = vmatprep.subr.mxu0 0.0
        %1132 = vmatpush1.msra.mxu0 %v1068
        %1133 = vmatprep.subr.mxu0 0.0
        %1134 = vmatpush1.msra.mxu0 %v1067
        %1135 = vmatprep.subr.mxu0 0.0
        %1136 = vmatpush2.msra.mxu0 0.0
        %1137 = vmatprep.subr.mxu0 0.0
        %1138 = vmatpush2.msra.mxu0 0.0
        %1139 = vmatprep.subr.mxu0 0.0
        %1140 = vmatpush2.msra.mxu0 0.0
        %1141 = vmatprep.subr.mxu0 0.0
        %1142 = vmatpush2.msra.mxu0 0.0
        %1143 = vmatprep.subr.mxu0 0.0
        %1144 = vmatpush2.msra.mxu0 0.0
        %1145 = vmatprep.subr.mxu0 0.0
        %1146 = vmatpush2.msra.mxu0 0.0
        %1147 = vmatprep.subr.mxu0 0.0
        %1148 = vmatpush2.msra.mxu0 0.0
        %1149 = vmatprep.subr.mxu0 0.0
        %1150 = vmatpush2.msra.mxu0 0.0
        %1151 = vmatprep.subr.mxu0 0.0
        %1152 = vmatpush2.msra.mxu0 0.0
        %1153 = vmatprep.subr.mxu0 0.0
        %1154 = vmatpush2.msra.mxu0 0.0
        %1155 = vmatprep.subr.mxu0 0.0
        %1156 = vmatpush2.msra.mxu0 0.0
        %1157 = vmatprep.subr.mxu0 0.0
        %1158 = vmatpush2.msra.mxu0 0.0
        %1159 = vmatprep.subr.mxu0 0.0
        %1160 = vmatpush2.msra.mxu0 0.0
        %1161 = vmatprep.subr.mxu0 0.0
        %1162 = vmatpush2.msra.mxu0 0.0
        %1163 = vmatprep.subr.mxu0 0.0
        %1164 = vmatpush2.msra.mxu0 0.0
        %1165 = vmatprep.subr.mxu0 0.0
        %1166 = vmatpush2.msra.mxu0 0.0
        %1167 = vmatprep.mubr.f32.mxu0 0.0
        %1168 = vmatmul.mubr.f32.gmra.mxu0 %v1092
        %v1169 = vpop.f32.mrf.mxu0
        %v1170 = vadd.f32 %v1074, %v1169
        %v1171 = vpop.f32.mrf.mxu0
        %1172 = vmatprep.mubr.f32.mxu0 0.0
        %1173 = vmatmul.mubr.f32.gmra.mxu0 %v1095
        %v1174 = vpop.f32.mrf.mxu0
        %v1175 = vadd.f32 %v1079, %v1174
        %v1176 = vpop.f32.mrf.mxu0
        %1177 = vmatprep.mubr.f32.mxu0 0.0
        %1178 = vmatmul.mubr.f32.gmra.mxu0 %v1098
        %v1179 = vpop.f32.mrf.mxu0
        %v1180 = vadd.f32 %v1084, %v1179
        %v1181 = vpop.f32.mrf.mxu0
        %1182 = vmatprep.mubr.f32.mxu0 0.0
        %1183 = vmatmul.mubr.f32.gmra.mxu0 %v1101
        %v1184 = vpop.f32.mrf.mxu0
        %v1185 = vadd.f32 %v1089, %v1184
        %v1186 = vpop.f32.mrf.mxu0
        %1187 = vdwg.mxu0
        %vm1188 = vcmask 384000
        %v1189 = vsel %vm1188, %v1170, -inf
        %v1190 = vsel %vm1188, %v1175, -inf
        %v1191 = vsel %vm1188, %v1180, -inf
        %vm1192 = vcmask 379904
        %v1193 = vsel %vm1192, %v1185, -inf
        %v1194 = vmax.f32 %v1189, %v1190
        %v1195 = vmax.f32 %v1191, %v1193
        %v1196 = vmax.f32 %v1194, %v1195
        %v1197 = vrot.slane %v1196, 4
        %v1198 = vmax.f32 %v1196, %v1197
        %v1199 = vrot.slane %v1198, 2
        %v1200 = vmax.f32 %v1198, %v1199
        %v1201 = vrot.slane %v1200, 1
        %v1202 = vmax.f32 %v1200, %v1201
        %v1203 = vsub.f32 %v1170, %v1202
        %v1204 = vsub.f32 %v1175, %v1202
        %v1205 = vsub.f32 %v1180, %v1202
        %v1206 = vsub.f32 %v1185, %v1202
        %v1207 = vmul.f32 %v1203, 1.442695
        %v1208 = vpow.pop %v1207
        %v1209 = vmul.f32 %v1204, 1.442695
        %v1210 = vpow.pop %v1209
        %v1211 = vmul.f32 %v1205, 1.442695
        %v1212 = vpow.pop %v1211
        %v1213 = vmul.f32 %v1206, 1.442695
        %v1214 = vpow.pop %v1213
        %v1215 = vsel %vm1188, %v1208, 0.0
        %v1216 = vsel %vm1188, %v1210, 0.0
        %v1217 = vadd.f32 %v1215, %v1216
        %v1218 = vsel %vm1188, %v1212, 0.0
        %v1219 = vadd.f32 %v1217, %v1218
        %v1220 = vsel %vm1192, %v1214, 0.0
        %v1221 = vadd.f32 %v1219, %v1220
        %v1222 = vrot.slane %v1221, 4
        %v1223 = vadd.f32 %v1221, %v1222
        %v1224 = vrot.slane %v1223, 2
        %v1225 = vadd.f32 %v1223, %v1224
        %v1226 = vrot.slane %v1225, 1
        %v1227 = vadd.f32 %v1225, %v1226
        %v1228 = vlog2.pop %v1227
        %v1229 = vmul.f32 %v1228, 0.6931472
        %v1230 = vsub.f32 %v1203, %v1229
        %v1231 = vsub.f32 %v1204, %v1229
        %v1232 = vsub.f32 %v1205, %v1229
        %v1233 = vsub.f32 %v1206, %v1229
        %1234 = vst.msk [vmem:[%s366] sm:$0xff] %vm1188, %v1230
        %1235 = vst.msk [vmem:[%s366 + $0x8] sm:$0xff] %vm1188, %v1231
        %1236 = vst.msk [vmem:[%s366 + $0x10] sm:$0xff] %vm1188, %v1232
        %1237 = vst.msk [vmem:[%s366 + $0x18] sm:$0xf] %vm1192, %v1233
        %vm1238 = vcmask 376832
        %1239 = vst.msk [vmem:[%s366 + $0x1c] sm:$0x1] %vm1238, 0.0
        %p1240 = scmp.lt.s32.totalorder %s21, 1
        %s1241 = scalar_select %p1240, %s21, 1
        %s1242 = smul.addr %s1241, 4
        %s1243 = smul.addr %s1242, 8
        %s1244 = scalar_lea.vmem %s9, %s1243
        // Predicated region
        $region61: #{wav2vec2_forward.1} parent=55 // pred_check
          %p1245 = pneg %p238
        $region62: #{wav2vec2_forward.1} parent=55 // pred_check_branch
          %1247 = sbr.rel (%p1245) target = $region64
        $region63: #{wav2vec2_forward.1} parent=55 // pred_region
          _
        $region64: #{wav2vec2_forward.1} parent=55 // pred_fallthru
          _
      $region56: #{wav2vec2_forward.1} parent=5 // pred_fallthru
        _
      %p1248 = scmp.le.s32.totalorder 2, %s16
      // Predicated region
      $region65: #{wav2vec2_forward.1} parent=5 // pred_check
        %p1249 = pneg %p1248
      $region66: #{wav2vec2_forward.1} parent=5 // pred_check_branch
        %1251 = sbr.rel (%p1249) target = $region68
      $region67: #{wav2vec2_forward.1} parent=5 // pred_region
        %s1252 = ssub.s32 %s16, 2
        // Predicated region
        $region69: #{wav2vec2_forward.1} parent=67 // pred_check
          %p1253 = pneg %p244
        $region70: #{wav2vec2_forward.1} parent=67 // pred_check_branch
          %1255 = sbr.rel (%p1253) target = $region72
        $region71: #{wav2vec2_forward.1} parent=67 // pred_region
          %p1256 = scmp.lt.s32.totalorder %s22, 1
          %s1257 = scalar_select %p1256, %s22, 1
          %s1258 = smul.addr %s1257, 4
          %s1259 = smul.addr %s1258, 8
          %s1260 = scalar_lea.vmem %s9, %s1259
        $region72: #{wav2vec2_forward.1} parent=67 // pred_fallthru
          _
      $region68: #{wav2vec2_forward.1} parent=5 // pred_fallthru
        _
    $region6: #{wav2vec2_forward.1} parent=1 // loop_footer
      %s20 = sadd.s32 1, %s16
    $region7: #{wav2vec2_forward.1} parent=1 // loop_footer_branch
      %15 = sbr.rel target = $region3
    $region8: #{wav2vec2_forward.1} parent=1 // loop_exit
      _
    %1261 = vsyncpa [#allocation3], 1
    %s1262 = scalar_lea.sflag [#allocation3], 1
    %1263 = vsyncpa %s1262, 1

</llo_original>
